<compile_context>
chip_gen: v5e
topology: v5e:2x2
jax: 0.10.0
libtpu: 0.0.40
codegen_flags: <defaults>
</compile_context>

<pallas_src>
import functools

import jax
import jax.numpy as jnp
from jax.experimental import pallas as pl
from jax.experimental.pallas import tpu as pltpu


def _yolo_head_kernel(x_ref, w1_ref, w2_ref, o_ref, *, H, W, bb, use_bf16):
    # x_ref : (bb, Cin, H*W)   images of this step, channel-major, spatial flat
    # w1_ref: (9, Cin, Cin)    conv1 weights per 3x3 tap, [t, co, ci]
    # w2_ref: (Cout, Cin)      conv2 (1x1) weights
    # o_ref : (bb, Cout, H*W)
    HW = H * W
    cdt = x_ref.dtype

    # ---- In-kernel halo masks (replicate conv1's 1-pixel zero padding). ----
    # Computed once per kernel invocation, reused for every image / tap.
    pos = jax.lax.broadcasted_iota(jnp.int32, (1, HW), 1)          # flat index
    if (W & (W - 1)) == 0:                                          # W power of 2
        hh = jnp.right_shift(pos, int(W).bit_length() - 1)
        ww = jnp.bitwise_and(pos, W - 1)
    else:
        hh = pos // W
        ww = pos - hh * W
    masks = []                                                       # (1, HW) each
    for kh in range(3):
        for kw in range(3):
            if kh == 1 and kw == 1:
                masks.append(None)          # center tap: all-ones, skip multiply
                continue
            dh, dw = kh - 1, kw - 1
            valid = ((hh + dh >= 0) & (hh + dh < H) &
                     (ww + dw >= 0) & (ww + dw < W))
            masks.append(valid.astype(cdt))

    # ---- Load weights once (resident across the per-image loop). ----
    w1_taps = [w1_ref[t] for t in range(9)]                          # (Cin, Cin)
    w2 = w2_ref[...]                                                 # (Cout, Cin)
    if use_bf16:
        # bf16 MXU operands (f32 accumulation); masks / ReLU stay f32 so v5e's
        # f32-only VPU path is unchanged.
        w1_taps = [w.astype(jnp.bfloat16) for w in w1_taps]
        w2 = w2.astype(jnp.bfloat16)

    # ---- Unrolled per-image loop (bb is small & static). ----
    for b in range(bb):
        x = x_ref[b]                                                 # (Cin, HW)

        acc = None
        for kh in range(3):
            for kw in range(3):
                t = kh * 3 + kw
                s = (kh - 1) * W + (kw - 1)       # flat spatial offset of tap
                shifted = x if s == 0 else pltpu.roll(x, shift=(-s) % HW, axis=1)
                if masks[t] is not None:
                    # zero the halo positions (wrapped roll reads) in f32
                    shifted = shifted * masks[t]
                rhs = shifted.astype(jnp.bfloat16) if use_bf16 else shifted
                part = jnp.dot(w1_taps[t], rhs,
                               preferred_element_type=jnp.float32)
                acc = part if acc is None else acc + part

        hidden = jnp.maximum(acc, 0.0)                               # ReLU in f32
        lhs2 = hidden.astype(jnp.bfloat16) if use_bf16 else hidden
        out = jnp.dot(w2, lhs2, preferred_element_type=jnp.float32)  # (Cout, HW)
        o_ref[b] = out.astype(o_ref.dtype)                           # lane-dense


def yolov11_head(x_nchw, w1_oihw, w2_oihw, *, images_per_step=None):
    """x: (B, Cin, H, W), w1: (Cin, Cin, 3, 3), w2: (Cout, Cin, 1, 1) (OIHW).

    Returns (B, Cout, H, W), matching the PyTorch module's convention.
    `images_per_step=None` processes the whole batch in ONE grid step (best for
    small, overhead-bound shapes); set it to e.g. B//2 to keep 2 parallel grid
    steps so both v7x TensorCores get work on larger workloads.
    """
    B, Cin, H, W = x_nchw.shape
    Cout = w2_oihw.shape[0]
    HW = H * W

    if images_per_step is None:
        images_per_step = B
    assert B % images_per_step == 0, "images_per_step must divide batch"
    nsteps = B // images_per_step

    # Row-major-compatible reshapes only: no transpose / pad of activations.
    x_flat = x_nchw.reshape(B, Cin, HW)

    # conv1 OIHW -> (kh, kw, co, ci) -> (9, Cin, Cin); conv2 -> (Cout, Cin).
    # (Tiny tensors; negligible cost.)
    w1_taps = jnp.transpose(w1_oihw, (2, 3, 0, 1)).reshape(9, Cin, Cin)
    w2_mat = w2_oihw.reshape(Cout, Cin)

    kernel = functools.partial(
        _yolo_head_kernel, H=H, W=W, bb=images_per_step,
        use_bf16=(Cin >= 128))

    out_flat = pl.pallas_call(
        kernel,
        out_shape=jax.ShapeDtypeStruct((B, Cout, HW), x_nchw.dtype),
        grid_spec=pltpu.PrefetchScalarGridSpec(
            num_scalar_prefetch=0,
            grid=(nsteps,),
            in_specs=[
                pl.BlockSpec((images_per_step, Cin, HW), lambda b: (b, 0, 0)),
                pl.BlockSpec((9, Cin, Cin), lambda b: (0, 0, 0)),
                pl.BlockSpec((Cout, Cin), lambda b: (0, 0)),
            ],
            out_specs=pl.BlockSpec((images_per_step, Cout, HW),
                                   lambda b: (b, 0, 0)),
        ),
        compiler_params=pltpu.CompilerParams(
            dimension_semantics=("parallel",)),
    )(x_flat, w1_taps, w2_mat)

    return out_flat.reshape(B, Cout, H, W)


def reference_head(x_nchw, w1_oihw, w2_oihw):
    """Pure-JAX reference (lax conv, NCHW/OIHW like PyTorch)."""
    h = jax.lax.conv_general_dilated(
        x_nchw, w1_oihw, window_strides=(1, 1), padding=((1, 1), (1, 1)),
        dimension_numbers=("NCHW", "OIHW", "NCHW"),
        precision=jax.lax.Precision.HIGHEST)
    h = jnp.maximum(h, 0.0)
    y = jax.lax.conv_general_dilated(
        h, w2_oihw, window_strides=(1, 1), padding="VALID",
        dimension_numbers=("NCHW", "OIHW", "NCHW"),
        precision=jax.lax.Precision.HIGHEST)
    return y


if __name__ == "__main__":
    # Small shapes consistent with the module.
    B, Cin, H, W = 2, 8, 16, 16
    num_classes = 3
    Cout = (5 + num_classes) * 3   # 24

    key = jax.random.PRNGKey(0)
    k_x, k_w1, k_w2 = jax.random.split(key, 3)

    x = jax.random.normal(k_x, (B, Cin, H, W), dtype=jnp.float32)
    w1 = jax.random.normal(k_w1, (Cin, Cin, 3, 3), dtype=jnp.float32) * 0.1
    w2 = jax.random.normal(k_w2, (Cout, Cin, 1, 1), dtype=jnp.float32) * 0.1

    out = jax.block_until_ready(yolov11_head(x, w1, w2))
    ref = jax.block_until_ready(reference_head(x, w1, w2))

    assert out.shape == (B, Cout, H, W), out.shape
    max_err = float(jnp.max(jnp.abs(out - ref)))
    assert jnp.allclose(out, ref, atol=1e-3, rtol=1e-3), max_err

    print("KERNEL_OK")
</pallas_src>

<mosaic_0001>
module attributes {stable_mosaic.version = 11 : i64} {
  func.func @_yolo_head_kernel(%arg0: i32, %arg1: memref<2x8x256xf32, #tpu.memory_space<vmem>>, %arg2: memref<9x8x8xf32, #tpu.memory_space<vmem>>, %arg3: memref<24x8xf32, #tpu.memory_space<vmem>>, %arg4: memref<2x24x256xf32, #tpu.memory_space<vmem>>) attributes {dimension_semantics = [#tpu.dimension_semantics<parallel>], iteration_bounds = array<i64: 1>, scalar_prefetch = 0 : i64, scratch_operands = 0 : i64, tpu.core_type = #tpu.core_type<tc>, window_params = [{transform_indices = @transform_0, window_bounds = array<i64: 2, 8, 256>}, {pipeline_mode = #tpu.pipeline_mode<synchronous>, transform_indices = @transform_1, window_bounds = array<i64: 9, 8, 8>}, {pipeline_mode = #tpu.pipeline_mode<synchronous>, transform_indices = @transform_2, window_bounds = array<i64: 24, 8>}, {transform_indices = @transform_3, window_bounds = array<i64: 2, 24, 256>}]} {
    %0 = tpu.iota {dimensions = array<i32: 1>} : vector<1x256xi32>
    %c4_i32 = arith.constant 4 : i32
    %1 = vector.broadcast %c4_i32 : i32 to vector<1x256xi32>
    %2 = arith.shrsi %0, %1 : vector<1x256xi32>
    %c15_i32 = arith.constant 15 : i32
    %3 = vector.broadcast %c15_i32 : i32 to vector<1x256xi32>
    %4 = arith.andi %0, %3 : vector<1x256xi32>
    %c-1_i32 = arith.constant -1 : i32
    %5 = vector.broadcast %c-1_i32 : i32 to vector<1x256xi32>
    %6 = arith.addi %2, %5 : vector<1x256xi32>
    %c0_i32 = arith.constant 0 : i32
    %7 = vector.broadcast %c0_i32 : i32 to vector<1x256xi32>
    %8 = arith.cmpi sge, %6, %7 : vector<1x256xi32>
    %c-1_i32_0 = arith.constant -1 : i32
    %9 = vector.broadcast %c-1_i32_0 : i32 to vector<1x256xi32>
    %10 = arith.addi %2, %9 : vector<1x256xi32>
    %c16_i32 = arith.constant 16 : i32
    %11 = vector.broadcast %c16_i32 : i32 to vector<1x256xi32>
    %12 = arith.cmpi slt, %10, %11 : vector<1x256xi32>
    %13 = arith.andi %8, %12 : vector<1x256xi1>
    %c-1_i32_1 = arith.constant -1 : i32
    %14 = vector.broadcast %c-1_i32_1 : i32 to vector<1x256xi32>
    %15 = arith.addi %4, %14 : vector<1x256xi32>
    %c0_i32_2 = arith.constant 0 : i32
    %16 = vector.broadcast %c0_i32_2 : i32 to vector<1x256xi32>
    %17 = arith.cmpi sge, %15, %16 : vector<1x256xi32>
    %18 = arith.andi %13, %17 : vector<1x256xi1>
    %c-1_i32_3 = arith.constant -1 : i32
    %19 = vector.broadcast %c-1_i32_3 : i32 to vector<1x256xi32>
    %20 = arith.addi %4, %19 : vector<1x256xi32>
    %c16_i32_4 = arith.constant 16 : i32
    %21 = vector.broadcast %c16_i32_4 : i32 to vector<1x256xi32>
    %22 = arith.cmpi slt, %20, %21 : vector<1x256xi32>
    %23 = arith.andi %18, %22 : vector<1x256xi1>
    %24 = arith.extui %23 : vector<1x256xi1> to vector<1x256xi32>
    %25 = arith.sitofp %24 : vector<1x256xi32> to vector<1x256xf32>
    %c-1_i32_5 = arith.constant -1 : i32
    %26 = vector.broadcast %c-1_i32_5 : i32 to vector<1x256xi32>
    %27 = arith.addi %2, %26 : vector<1x256xi32>
    %c0_i32_6 = arith.constant 0 : i32
    %28 = vector.broadcast %c0_i32_6 : i32 to vector<1x256xi32>
    %29 = arith.cmpi sge, %27, %28 : vector<1x256xi32>
    %c-1_i32_7 = arith.constant -1 : i32
    %30 = vector.broadcast %c-1_i32_7 : i32 to vector<1x256xi32>
    %31 = arith.addi %2, %30 : vector<1x256xi32>
    %c16_i32_8 = arith.constant 16 : i32
    %32 = vector.broadcast %c16_i32_8 : i32 to vector<1x256xi32>
    %33 = arith.cmpi slt, %31, %32 : vector<1x256xi32>
    %34 = arith.andi %29, %33 : vector<1x256xi1>
    %c0_i32_9 = arith.constant 0 : i32
    %35 = vector.broadcast %c0_i32_9 : i32 to vector<1x256xi32>
    %36 = arith.addi %4, %35 : vector<1x256xi32>
    %c0_i32_10 = arith.constant 0 : i32
    %37 = vector.broadcast %c0_i32_10 : i32 to vector<1x256xi32>
    %38 = arith.cmpi sge, %36, %37 : vector<1x256xi32>
    %39 = arith.andi %34, %38 : vector<1x256xi1>
    %c0_i32_11 = arith.constant 0 : i32
    %40 = vector.broadcast %c0_i32_11 : i32 to vector<1x256xi32>
    %41 = arith.addi %4, %40 : vector<1x256xi32>
    %c16_i32_12 = arith.constant 16 : i32
    %42 = vector.broadcast %c16_i32_12 : i32 to vector<1x256xi32>
    %43 = arith.cmpi slt, %41, %42 : vector<1x256xi32>
    %44 = arith.andi %39, %43 : vector<1x256xi1>
    %45 = arith.extui %44 : vector<1x256xi1> to vector<1x256xi32>
    %46 = arith.sitofp %45 : vector<1x256xi32> to vector<1x256xf32>
    %c-1_i32_13 = arith.constant -1 : i32
    %47 = vector.broadcast %c-1_i32_13 : i32 to vector<1x256xi32>
    %48 = arith.addi %2, %47 : vector<1x256xi32>
    %c0_i32_14 = arith.constant 0 : i32
    %49 = vector.broadcast %c0_i32_14 : i32 to vector<1x256xi32>
    %50 = arith.cmpi sge, %48, %49 : vector<1x256xi32>
    %c-1_i32_15 = arith.constant -1 : i32
    %51 = vector.broadcast %c-1_i32_15 : i32 to vector<1x256xi32>
    %52 = arith.addi %2, %51 : vector<1x256xi32>
    %c16_i32_16 = arith.constant 16 : i32
    %53 = vector.broadcast %c16_i32_16 : i32 to vector<1x256xi32>
    %54 = arith.cmpi slt, %52, %53 : vector<1x256xi32>
    %55 = arith.andi %50, %54 : vector<1x256xi1>
    %c1_i32 = arith.constant 1 : i32
    %56 = vector.broadcast %c1_i32 : i32 to vector<1x256xi32>
    %57 = arith.addi %4, %56 : vector<1x256xi32>
    %c0_i32_17 = arith.constant 0 : i32
    %58 = vector.broadcast %c0_i32_17 : i32 to vector<1x256xi32>
    %59 = arith.cmpi sge, %57, %58 : vector<1x256xi32>
    %60 = arith.andi %55, %59 : vector<1x256xi1>
    %c1_i32_18 = arith.constant 1 : i32
    %61 = vector.broadcast %c1_i32_18 : i32 to vector<1x256xi32>
    %62 = arith.addi %4, %61 : vector<1x256xi32>
    %c16_i32_19 = arith.constant 16 : i32
    %63 = vector.broadcast %c16_i32_19 : i32 to vector<1x256xi32>
    %64 = arith.cmpi slt, %62, %63 : vector<1x256xi32>
    %65 = arith.andi %60, %64 : vector<1x256xi1>
    %66 = arith.extui %65 : vector<1x256xi1> to vector<1x256xi32>
    %67 = arith.sitofp %66 : vector<1x256xi32> to vector<1x256xf32>
    %c0_i32_20 = arith.constant 0 : i32
    %68 = vector.broadcast %c0_i32_20 : i32 to vector<1x256xi32>
    %69 = arith.addi %2, %68 : vector<1x256xi32>
    %c0_i32_21 = arith.constant 0 : i32
    %70 = vector.broadcast %c0_i32_21 : i32 to vector<1x256xi32>
    %71 = arith.cmpi sge, %69, %70 : vector<1x256xi32>
    %c0_i32_22 = arith.constant 0 : i32
    %72 = vector.broadcast %c0_i32_22 : i32 to vector<1x256xi32>
    %73 = arith.addi %2, %72 : vector<1x256xi32>
    %c16_i32_23 = arith.constant 16 : i32
    %74 = vector.broadcast %c16_i32_23 : i32 to vector<1x256xi32>
    %75 = arith.cmpi slt, %73, %74 : vector<1x256xi32>
    %76 = arith.andi %71, %75 : vector<1x256xi1>
    %c-1_i32_24 = arith.constant -1 : i32
    %77 = vector.broadcast %c-1_i32_24 : i32 to vector<1x256xi32>
    %78 = arith.addi %4, %77 : vector<1x256xi32>
    %c0_i32_25 = arith.constant 0 : i32
    %79 = vector.broadcast %c0_i32_25 : i32 to vector<1x256xi32>
    %80 = arith.cmpi sge, %78, %79 : vector<1x256xi32>
    %81 = arith.andi %76, %80 : vector<1x256xi1>
    %c-1_i32_26 = arith.constant -1 : i32
    %82 = vector.broadcast %c-1_i32_26 : i32 to vector<1x256xi32>
    %83 = arith.addi %4, %82 : vector<1x256xi32>
    %c16_i32_27 = arith.constant 16 : i32
    %84 = vector.broadcast %c16_i32_27 : i32 to vector<1x256xi32>
    %85 = arith.cmpi slt, %83, %84 : vector<1x256xi32>
    %86 = arith.andi %81, %85 : vector<1x256xi1>
    %87 = arith.extui %86 : vector<1x256xi1> to vector<1x256xi32>
    %88 = arith.sitofp %87 : vector<1x256xi32> to vector<1x256xf32>
    %c0_i32_28 = arith.constant 0 : i32
    %89 = vector.broadcast %c0_i32_28 : i32 to vector<1x256xi32>
    %90 = arith.addi %2, %89 : vector<1x256xi32>
    %c0_i32_29 = arith.constant 0 : i32
    %91 = vector.broadcast %c0_i32_29 : i32 to vector<1x256xi32>
    %92 = arith.cmpi sge, %90, %91 : vector<1x256xi32>
    %c0_i32_30 = arith.constant 0 : i32
    %93 = vector.broadcast %c0_i32_30 : i32 to vector<1x256xi32>
    %94 = arith.addi %2, %93 : vector<1x256xi32>
    %c16_i32_31 = arith.constant 16 : i32
    %95 = vector.broadcast %c16_i32_31 : i32 to vector<1x256xi32>
    %96 = arith.cmpi slt, %94, %95 : vector<1x256xi32>
    %97 = arith.andi %92, %96 : vector<1x256xi1>
    %c1_i32_32 = arith.constant 1 : i32
    %98 = vector.broadcast %c1_i32_32 : i32 to vector<1x256xi32>
    %99 = arith.addi %4, %98 : vector<1x256xi32>
    %c0_i32_33 = arith.constant 0 : i32
    %100 = vector.broadcast %c0_i32_33 : i32 to vector<1x256xi32>
    %101 = arith.cmpi sge, %99, %100 : vector<1x256xi32>
    %102 = arith.andi %97, %101 : vector<1x256xi1>
    %c1_i32_34 = arith.constant 1 : i32
    %103 = vector.broadcast %c1_i32_34 : i32 to vector<1x256xi32>
    %104 = arith.addi %4, %103 : vector<1x256xi32>
    %c16_i32_35 = arith.constant 16 : i32
    %105 = vector.broadcast %c16_i32_35 : i32 to vector<1x256xi32>
    %106 = arith.cmpi slt, %104, %105 : vector<1x256xi32>
    %107 = arith.andi %102, %106 : vector<1x256xi1>
    %108 = arith.extui %107 : vector<1x256xi1> to vector<1x256xi32>
    %109 = arith.sitofp %108 : vector<1x256xi32> to vector<1x256xf32>
    %c1_i32_36 = arith.constant 1 : i32
    %110 = vector.broadcast %c1_i32_36 : i32 to vector<1x256xi32>
    %111 = arith.addi %2, %110 : vector<1x256xi32>
    %c0_i32_37 = arith.constant 0 : i32
    %112 = vector.broadcast %c0_i32_37 : i32 to vector<1x256xi32>
    %113 = arith.cmpi sge, %111, %112 : vector<1x256xi32>
    %c1_i32_38 = arith.constant 1 : i32
    %114 = vector.broadcast %c1_i32_38 : i32 to vector<1x256xi32>
    %115 = arith.addi %2, %114 : vector<1x256xi32>
    %c16_i32_39 = arith.constant 16 : i32
    %116 = vector.broadcast %c16_i32_39 : i32 to vector<1x256xi32>
    %117 = arith.cmpi slt, %115, %116 : vector<1x256xi32>
    %118 = arith.andi %113, %117 : vector<1x256xi1>
    %c-1_i32_40 = arith.constant -1 : i32
    %119 = vector.broadcast %c-1_i32_40 : i32 to vector<1x256xi32>
    %120 = arith.addi %4, %119 : vector<1x256xi32>
    %c0_i32_41 = arith.constant 0 : i32
    %121 = vector.broadcast %c0_i32_41 : i32 to vector<1x256xi32>
    %122 = arith.cmpi sge, %120, %121 : vector<1x256xi32>
    %123 = arith.andi %118, %122 : vector<1x256xi1>
    %c-1_i32_42 = arith.constant -1 : i32
    %124 = vector.broadcast %c-1_i32_42 : i32 to vector<1x256xi32>
    %125 = arith.addi %4, %124 : vector<1x256xi32>
    %c16_i32_43 = arith.constant 16 : i32
    %126 = vector.broadcast %c16_i32_43 : i32 to vector<1x256xi32>
    %127 = arith.cmpi slt, %125, %126 : vector<1x256xi32>
    %128 = arith.andi %123, %127 : vector<1x256xi1>
    %129 = arith.extui %128 : vector<1x256xi1> to vector<1x256xi32>
    %130 = arith.sitofp %129 : vector<1x256xi32> to vector<1x256xf32>
    %c1_i32_44 = arith.constant 1 : i32
    %131 = vector.broadcast %c1_i32_44 : i32 to vector<1x256xi32>
    %132 = arith.addi %2, %131 : vector<1x256xi32>
    %c0_i32_45 = arith.constant 0 : i32
    %133 = vector.broadcast %c0_i32_45 : i32 to vector<1x256xi32>
    %134 = arith.cmpi sge, %132, %133 : vector<1x256xi32>
    %c1_i32_46 = arith.constant 1 : i32
    %135 = vector.broadcast %c1_i32_46 : i32 to vector<1x256xi32>
    %136 = arith.addi %2, %135 : vector<1x256xi32>
    %c16_i32_47 = arith.constant 16 : i32
    %137 = vector.broadcast %c16_i32_47 : i32 to vector<1x256xi32>
    %138 = arith.cmpi slt, %136, %137 : vector<1x256xi32>
    %139 = arith.andi %134, %138 : vector<1x256xi1>
    %c0_i32_48 = arith.constant 0 : i32
    %140 = vector.broadcast %c0_i32_48 : i32 to vector<1x256xi32>
    %141 = arith.addi %4, %140 : vector<1x256xi32>
    %c0_i32_49 = arith.constant 0 : i32
    %142 = vector.broadcast %c0_i32_49 : i32 to vector<1x256xi32>
    %143 = arith.cmpi sge, %141, %142 : vector<1x256xi32>
    %144 = arith.andi %139, %143 : vector<1x256xi1>
    %c0_i32_50 = arith.constant 0 : i32
    %145 = vector.broadcast %c0_i32_50 : i32 to vector<1x256xi32>
    %146 = arith.addi %4, %145 : vector<1x256xi32>
    %c16_i32_51 = arith.constant 16 : i32
    %147 = vector.broadcast %c16_i32_51 : i32 to vector<1x256xi32>
    %148 = arith.cmpi slt, %146, %147 : vector<1x256xi32>
    %149 = arith.andi %144, %148 : vector<1x256xi1>
    %150 = arith.extui %149 : vector<1x256xi1> to vector<1x256xi32>
    %151 = arith.sitofp %150 : vector<1x256xi32> to vector<1x256xf32>
    %c1_i32_52 = arith.constant 1 : i32
    %152 = vector.broadcast %c1_i32_52 : i32 to vector<1x256xi32>
    %153 = arith.addi %2, %152 : vector<1x256xi32>
    %c0_i32_53 = arith.constant 0 : i32
    %154 = vector.broadcast %c0_i32_53 : i32 to vector<1x256xi32>
    %155 = arith.cmpi sge, %153, %154 : vector<1x256xi32>
    %c1_i32_54 = arith.constant 1 : i32
    %156 = vector.broadcast %c1_i32_54 : i32 to vector<1x256xi32>
    %157 = arith.addi %2, %156 : vector<1x256xi32>
    %c16_i32_55 = arith.constant 16 : i32
    %158 = vector.broadcast %c16_i32_55 : i32 to vector<1x256xi32>
    %159 = arith.cmpi slt, %157, %158 : vector<1x256xi32>
    %160 = arith.andi %155, %159 : vector<1x256xi1>
    %c1_i32_56 = arith.constant 1 : i32
    %161 = vector.broadcast %c1_i32_56 : i32 to vector<1x256xi32>
    %162 = arith.addi %4, %161 : vector<1x256xi32>
    %c0_i32_57 = arith.constant 0 : i32
    %163 = vector.broadcast %c0_i32_57 : i32 to vector<1x256xi32>
    %164 = arith.cmpi sge, %162, %163 : vector<1x256xi32>
    %165 = arith.andi %160, %164 : vector<1x256xi1>
    %c1_i32_58 = arith.constant 1 : i32
    %166 = vector.broadcast %c1_i32_58 : i32 to vector<1x256xi32>
    %167 = arith.addi %4, %166 : vector<1x256xi32>
    %c16_i32_59 = arith.constant 16 : i32
    %168 = vector.broadcast %c16_i32_59 : i32 to vector<1x256xi32>
    %169 = arith.cmpi slt, %167, %168 : vector<1x256xi32>
    %170 = arith.andi %165, %169 : vector<1x256xi1>
    %171 = arith.extui %170 : vector<1x256xi1> to vector<1x256xi32>
    %172 = arith.sitofp %171 : vector<1x256xi32> to vector<1x256xf32>
    %c0 = arith.constant 0 : index
    %c0_60 = arith.constant 0 : index
    %c0_61 = arith.constant 0 : index
    %173 = vector.load %arg2[%c0, %c0_60, %c0_61] : memref<9x8x8xf32, #tpu.memory_space<vmem>>, vector<1x8x8xf32>
    %174 = vector.shape_cast %173 : vector<1x8x8xf32> to vector<8x8xf32>
    %c1 = arith.constant 1 : index
    %c0_62 = arith.constant 0 : index
    %c0_63 = arith.constant 0 : index
    %175 = vector.load %arg2[%c1, %c0_62, %c0_63] : memref<9x8x8xf32, #tpu.memory_space<vmem>>, vector<1x8x8xf32>
    %176 = vector.shape_cast %175 : vector<1x8x8xf32> to vector<8x8xf32>
    %c2 = arith.constant 2 : index
    %c0_64 = arith.constant 0 : index
    %c0_65 = arith.constant 0 : index
    %177 = vector.load %arg2[%c2, %c0_64, %c0_65] : memref<9x8x8xf32, #tpu.memory_space<vmem>>, vector<1x8x8xf32>
    %178 = vector.shape_cast %177 : vector<1x8x8xf32> to vector<8x8xf32>
    %c3 = arith.constant 3 : index
    %c0_66 = arith.constant 0 : index
    %c0_67 = arith.constant 0 : index
    %179 = vector.load %arg2[%c3, %c0_66, %c0_67] : memref<9x8x8xf32, #tpu.memory_space<vmem>>, vector<1x8x8xf32>
    %180 = vector.shape_cast %179 : vector<1x8x8xf32> to vector<8x8xf32>
    %c4 = arith.constant 4 : index
    %c0_68 = arith.constant 0 : index
    %c0_69 = arith.constant 0 : index
    %181 = vector.load %arg2[%c4, %c0_68, %c0_69] : memref<9x8x8xf32, #tpu.memory_space<vmem>>, vector<1x8x8xf32>
    %182 = vector.shape_cast %181 : vector<1x8x8xf32> to vector<8x8xf32>
    %c5 = arith.constant 5 : index
    %c0_70 = arith.constant 0 : index
    %c0_71 = arith.constant 0 : index
    %183 = vector.load %arg2[%c5, %c0_70, %c0_71] : memref<9x8x8xf32, #tpu.memory_space<vmem>>, vector<1x8x8xf32>
    %184 = vector.shape_cast %183 : vector<1x8x8xf32> to vector<8x8xf32>
    %c6 = arith.constant 6 : index
    %c0_72 = arith.constant 0 : index
    %c0_73 = arith.constant 0 : index
    %185 = vector.load %arg2[%c6, %c0_72, %c0_73] : memref<9x8x8xf32, #tpu.memory_space<vmem>>, vector<1x8x8xf32>
    %186 = vector.shape_cast %185 : vector<1x8x8xf32> to vector<8x8xf32>
    %c7 = arith.constant 7 : index
    %c0_74 = arith.constant 0 : index
    %c0_75 = arith.constant 0 : index
    %187 = vector.load %arg2[%c7, %c0_74, %c0_75] : memref<9x8x8xf32, #tpu.memory_space<vmem>>, vector<1x8x8xf32>
    %188 = vector.shape_cast %187 : vector<1x8x8xf32> to vector<8x8xf32>
    %c8 = arith.constant 8 : index
    %c0_76 = arith.constant 0 : index
    %c0_77 = arith.constant 0 : index
    %189 = vector.load %arg2[%c8, %c0_76, %c0_77] : memref<9x8x8xf32, #tpu.memory_space<vmem>>, vector<1x8x8xf32>
    %190 = vector.shape_cast %189 : vector<1x8x8xf32> to vector<8x8xf32>
    %c0_78 = arith.constant 0 : index
    %c0_79 = arith.constant 0 : index
    %191 = vector.load %arg3[%c0_78, %c0_79] : memref<24x8xf32, #tpu.memory_space<vmem>>, vector<24x8xf32>
    %c0_80 = arith.constant 0 : index
    %c0_81 = arith.constant 0 : index
    %c0_82 = arith.constant 0 : index
    %192 = vector.load %arg1[%c0_80, %c0_81, %c0_82] : memref<2x8x256xf32, #tpu.memory_space<vmem>>, vector<1x8x256xf32>
    %193 = vector.shape_cast %192 : vector<1x8x256xf32> to vector<8x256xf32>
    %c17_i32 = arith.constant 17 : i32
    %194 = tpu.dynamic_rotate %193 by %c17_i32 dim 1 : vector<8x256xf32>, i32 -> vector<8x256xf32>
    %195 = vector.broadcast %25 : vector<1x256xf32> to vector<8x256xf32>
    %196 = arith.mulf %194, %195 : vector<8x256xf32>
    %cst = arith.constant dense<0.000000e+00> : vector<8x256xf32>
    %197 = tpu.matmul %174, %196, %cst {dimension_numbers = #tpu.dot_dimension_numbers<[1], [0], [0], [1], [0, 0, 1, 1], [], []>} : vector<8x8xf32>, vector<8x256xf32>, vector<8x256xf32> -> vector<8x256xf32>
    %c16_i32_83 = arith.constant 16 : i32
    %198 = tpu.dynamic_rotate %193 by %c16_i32_83 dim 1 : vector<8x256xf32>, i32 -> vector<8x256xf32>
    %199 = vector.broadcast %46 : vector<1x256xf32> to vector<8x256xf32>
    %200 = arith.mulf %198, %199 : vector<8x256xf32>
    %cst_84 = arith.constant dense<0.000000e+00> : vector<8x256xf32>
    %201 = tpu.matmul %176, %200, %cst_84 {dimension_numbers = #tpu.dot_dimension_numbers<[1], [0], [0], [1], [0, 0, 1, 1], [], []>} : vector<8x8xf32>, vector<8x256xf32>, vector<8x256xf32> -> vector<8x256xf32>
    %202 = arith.addf %197, %201 : vector<8x256xf32>
    %c15_i32_85 = arith.constant 15 : i32
    %203 = tpu.dynamic_rotate %193 by %c15_i32_85 dim 1 : vector<8x256xf32>, i32 -> vector<8x256xf32>
    %204 = vector.broadcast %67 : vector<1x256xf32> to vector<8x256xf32>
    %205 = arith.mulf %203, %204 : vector<8x256xf32>
    %cst_86 = arith.constant dense<0.000000e+00> : vector<8x256xf32>
    %206 = tpu.matmul %178, %205, %cst_86 {dimension_numbers = #tpu.dot_dimension_numbers<[1], [0], [0], [1], [0, 0, 1, 1], [], []>} : vector<8x8xf32>, vector<8x256xf32>, vector<8x256xf32> -> vector<8x256xf32>
    %207 = arith.addf %202, %206 : vector<8x256xf32>
    %c1_i32_87 = arith.constant 1 : i32
    %208 = tpu.dynamic_rotate %193 by %c1_i32_87 dim 1 : vector<8x256xf32>, i32 -> vector<8x256xf32>
    %209 = vector.broadcast %88 : vector<1x256xf32> to vector<8x256xf32>
    %210 = arith.mulf %208, %209 : vector<8x256xf32>
    %cst_88 = arith.constant dense<0.000000e+00> : vector<8x256xf32>
    %211 = tpu.matmul %180, %210, %cst_88 {dimension_numbers = #tpu.dot_dimension_numbers<[1], [0], [0], [1], [0, 0, 1, 1], [], []>} : vector<8x8xf32>, vector<8x256xf32>, vector<8x256xf32> -> vector<8x256xf32>
    %212 = arith.addf %207, %211 : vector<8x256xf32>
    %cst_89 = arith.constant dense<0.000000e+00> : vector<8x256xf32>
    %213 = tpu.matmul %182, %193, %cst_89 {dimension_numbers = #tpu.dot_dimension_numbers<[1], [0], [0], [1], [0, 0, 1, 1], [], []>} : vector<8x8xf32>, vector<8x256xf32>, vector<8x256xf32> -> vector<8x256xf32>
    %214 = arith.addf %212, %213 : vector<8x256xf32>
    %c255_i32 = arith.constant 255 : i32
    %215 = tpu.dynamic_rotate %193 by %c255_i32 dim 1 : vector<8x256xf32>, i32 -> vector<8x256xf32>
    %216 = vector.broadcast %109 : vector<1x256xf32> to vector<8x256xf32>
    %217 = arith.mulf %215, %216 : vector<8x256xf32>
    %cst_90 = arith.constant dense<0.000000e+00> : vector<8x256xf32>
    %218 = tpu.matmul %184, %217, %cst_90 {dimension_numbers = #tpu.dot_dimension_numbers<[1], [0], [0], [1], [0, 0, 1, 1], [], []>} : vector<8x8xf32>, vector<8x256xf32>, vector<8x256xf32> -> vector<8x256xf32>
    %219 = arith.addf %214, %218 : vector<8x256xf32>
    %c241_i32 = arith.constant 241 : i32
    %220 = tpu.dynamic_rotate %193 by %c241_i32 dim 1 : vector<8x256xf32>, i32 -> vector<8x256xf32>
    %221 = vector.broadcast %130 : vector<1x256xf32> to vector<8x256xf32>
    %222 = arith.mulf %220, %221 : vector<8x256xf32>
    %cst_91 = arith.constant dense<0.000000e+00> : vector<8x256xf32>
    %223 = tpu.matmul %186, %222, %cst_91 {dimension_numbers = #tpu.dot_dimension_numbers<[1], [0], [0], [1], [0, 0, 1, 1], [], []>} : vector<8x8xf32>, vector<8x256xf32>, vector<8x256xf32> -> vector<8x256xf32>
    %224 = arith.addf %219, %223 : vector<8x256xf32>
    %c240_i32 = arith.constant 240 : i32
    %225 = tpu.dynamic_rotate %193 by %c240_i32 dim 1 : vector<8x256xf32>, i32 -> vector<8x256xf32>
    %226 = vector.broadcast %151 : vector<1x256xf32> to vector<8x256xf32>
    %227 = arith.mulf %225, %226 : vector<8x256xf32>
    %cst_92 = arith.constant dense<0.000000e+00> : vector<8x256xf32>
    %228 = tpu.matmul %188, %227, %cst_92 {dimension_numbers = #tpu.dot_dimension_numbers<[1], [0], [0], [1], [0, 0, 1, 1], [], []>} : vector<8x8xf32>, vector<8x256xf32>, vector<8x256xf32> -> vector<8x256xf32>
    %229 = arith.addf %224, %228 : vector<8x256xf32>
    %c239_i32 = arith.constant 239 : i32
    %230 = tpu.dynamic_rotate %193 by %c239_i32 dim 1 : vector<8x256xf32>, i32 -> vector<8x256xf32>
    %231 = vector.broadcast %172 : vector<1x256xf32> to vector<8x256xf32>
    %232 = arith.mulf %230, %231 : vector<8x256xf32>
    %cst_93 = arith.constant dense<0.000000e+00> : vector<8x256xf32>
    %233 = tpu.matmul %190, %232, %cst_93 {dimension_numbers = #tpu.dot_dimension_numbers<[1], [0], [0], [1], [0, 0, 1, 1], [], []>} : vector<8x8xf32>, vector<8x256xf32>, vector<8x256xf32> -> vector<8x256xf32>
    %234 = arith.addf %229, %233 : vector<8x256xf32>
    %cst_94 = arith.constant 0.000000e+00 : f32
    %235 = vector.broadcast %cst_94 : f32 to vector<8x256xf32>
    %236 = arith.maximumf %234, %235 : vector<8x256xf32>
    %cst_95 = arith.constant dense<0.000000e+00> : vector<24x256xf32>
    %237 = tpu.matmul %191, %236, %cst_95 {dimension_numbers = #tpu.dot_dimension_numbers<[1], [0], [0], [1], [0, 0, 1, 1], [], []>} : vector<24x8xf32>, vector<8x256xf32>, vector<24x256xf32> -> vector<24x256xf32>
    %c0_96 = arith.constant 0 : index
    %c0_97 = arith.constant 0 : index
    %c0_98 = arith.constant 0 : index
    %238 = vector.load %arg4[%c0_96, %c0_97, %c0_98] : memref<2x24x256xf32, #tpu.memory_space<vmem>>, vector<1x24x256xf32>
    %239 = vector.shape_cast %238 : vector<1x24x256xf32> to vector<24x256xf32>
    %240 = vector.shape_cast %237 : vector<24x256xf32> to vector<1x24x256xf32>
    tpu.vector_store %arg4[%c0_96, %c0_97, %c0_98], %240 {strides = array<i32>} : memref<2x24x256xf32, #tpu.memory_space<vmem>>, vector<1x24x256xf32>,
    %c1_99 = arith.constant 1 : index
    %c0_100 = arith.constant 0 : index
    %c0_101 = arith.constant 0 : index
    %241 = vector.load %arg1[%c1_99, %c0_100, %c0_101] : memref<2x8x256xf32, #tpu.memory_space<vmem>>, vector<1x8x256xf32>
    %242 = vector.shape_cast %241 : vector<1x8x256xf32> to vector<8x256xf32>
    %c17_i32_102 = arith.constant 17 : i32
    %243 = tpu.dynamic_rotate %242 by %c17_i32_102 dim 1 : vector<8x256xf32>, i32 -> vector<8x256xf32>
    %244 = vector.broadcast %25 : vector<1x256xf32> to vector<8x256xf32>
    %245 = arith.mulf %243, %244 : vector<8x256xf32>
    %cst_103 = arith.constant dense<0.000000e+00> : vector<8x256xf32>
    %246 = tpu.matmul %174, %245, %cst_103 {dimension_numbers = #tpu.dot_dimension_numbers<[1], [0], [0], [1], [0, 0, 1, 1], [], []>} : vector<8x8xf32>, vector<8x256xf32>, vector<8x256xf32> -> vector<8x256xf32>
    %c16_i32_104 = arith.constant 16 : i32
    %247 = tpu.dynamic_rotate %242 by %c16_i32_104 dim 1 : vector<8x256xf32>, i32 -> vector<8x256xf32>
    %248 = vector.broadcast %46 : vector<1x256xf32> to vector<8x256xf32>
    %249 = arith.mulf %247, %248 : vector<8x256xf32>
    %cst_105 = arith.constant dense<0.000000e+00> : vector<8x256xf32>
    %250 = tpu.matmul %176, %249, %cst_105 {dimension_numbers = #tpu.dot_dimension_numbers<[1], [0], [0], [1], [0, 0, 1, 1], [], []>} : vector<8x8xf32>, vector<8x256xf32>, vector<8x256xf32> -> vector<8x256xf32>
    %251 = arith.addf %246, %250 : vector<8x256xf32>
    %c15_i32_106 = arith.constant 15 : i32
    %252 = tpu.dynamic_rotate %242 by %c15_i32_106 dim 1 : vector<8x256xf32>, i32 -> vector<8x256xf32>
    %253 = vector.broadcast %67 : vector<1x256xf32> to vector<8x256xf32>
    %254 = arith.mulf %252, %253 : vector<8x256xf32>
    %cst_107 = arith.constant dense<0.000000e+00> : vector<8x256xf32>
    %255 = tpu.matmul %178, %254, %cst_107 {dimension_numbers = #tpu.dot_dimension_numbers<[1], [0], [0], [1], [0, 0, 1, 1], [], []>} : vector<8x8xf32>, vector<8x256xf32>, vector<8x256xf32> -> vector<8x256xf32>
    %256 = arith.addf %251, %255 : vector<8x256xf32>
    %c1_i32_108 = arith.constant 1 : i32
    %257 = tpu.dynamic_rotate %242 by %c1_i32_108 dim 1 : vector<8x256xf32>, i32 -> vector<8x256xf32>
    %258 = vector.broadcast %88 : vector<1x256xf32> to vector<8x256xf32>
    %259 = arith.mulf %257, %258 : vector<8x256xf32>
    %cst_109 = arith.constant dense<0.000000e+00> : vector<8x256xf32>
    %260 = tpu.matmul %180, %259, %cst_109 {dimension_numbers = #tpu.dot_dimension_numbers<[1], [0], [0], [1], [0, 0, 1, 1], [], []>} : vector<8x8xf32>, vector<8x256xf32>, vector<8x256xf32> -> vector<8x256xf32>
    %261 = arith.addf %256, %260 : vector<8x256xf32>
    %cst_110 = arith.constant dense<0.000000e+00> : vector<8x256xf32>
    %262 = tpu.matmul %182, %242, %cst_110 {dimension_numbers = #tpu.dot_dimension_numbers<[1], [0], [0], [1], [0, 0, 1, 1], [], []>} : vector<8x8xf32>, vector<8x256xf32>, vector<8x256xf32> -> vector<8x256xf32>
    %263 = arith.addf %261, %262 : vector<8x256xf32>
    %c255_i32_111 = arith.constant 255 : i32
    %264 = tpu.dynamic_rotate %242 by %c255_i32_111 dim 1 : vector<8x256xf32>, i32 -> vector<8x256xf32>
    %265 = vector.broadcast %109 : vector<1x256xf32> to vector<8x256xf32>
    %266 = arith.mulf %264, %265 : vector<8x256xf32>
    %cst_112 = arith.constant dense<0.000000e+00> : vector<8x256xf32>
    %267 = tpu.matmul %184, %266, %cst_112 {dimension_numbers = #tpu.dot_dimension_numbers<[1], [0], [0], [1], [0, 0, 1, 1], [], []>} : vector<8x8xf32>, vector<8x256xf32>, vector<8x256xf32> -> vector<8x256xf32>
    %268 = arith.addf %263, %267 : vector<8x256xf32>
    %c241_i32_113 = arith.constant 241 : i32
    %269 = tpu.dynamic_rotate %242 by %c241_i32_113 dim 1 : vector<8x256xf32>, i32 -> vector<8x256xf32>
    %270 = vector.broadcast %130 : vector<1x256xf32> to vector<8x256xf32>
    %271 = arith.mulf %269, %270 : vector<8x256xf32>
    %cst_114 = arith.constant dense<0.000000e+00> : vector<8x256xf32>
    %272 = tpu.matmul %186, %271, %cst_114 {dimension_numbers = #tpu.dot_dimension_numbers<[1], [0], [0], [1], [0, 0, 1, 1], [], []>} : vector<8x8xf32>, vector<8x256xf32>, vector<8x256xf32> -> vector<8x256xf32>
    %273 = arith.addf %268, %272 : vector<8x256xf32>
    %c240_i32_115 = arith.constant 240 : i32
    %274 = tpu.dynamic_rotate %242 by %c240_i32_115 dim 1 : vector<8x256xf32>, i32 -> vector<8x256xf32>
    %275 = vector.broadcast %151 : vector<1x256xf32> to vector<8x256xf32>
    %276 = arith.mulf %274, %275 : vector<8x256xf32>
    %cst_116 = arith.constant dense<0.000000e+00> : vector<8x256xf32>
    %277 = tpu.matmul %188, %276, %cst_116 {dimension_numbers = #tpu.dot_dimension_numbers<[1], [0], [0], [1], [0, 0, 1, 1], [], []>} : vector<8x8xf32>, vector<8x256xf32>, vector<8x256xf32> -> vector<8x256xf32>
    %278 = arith.addf %273, %277 : vector<8x256xf32>
    %c239_i32_117 = arith.constant 239 : i32
    %279 = tpu.dynamic_rotate %242 by %c239_i32_117 dim 1 : vector<8x256xf32>, i32 -> vector<8x256xf32>
    %280 = vector.broadcast %172 : vector<1x256xf32> to vector<8x256xf32>
    %281 = arith.mulf %279, %280 : vector<8x256xf32>
    %cst_118 = arith.constant dense<0.000000e+00> : vector<8x256xf32>
    %282 = tpu.matmul %190, %281, %cst_118 {dimension_numbers = #tpu.dot_dimension_numbers<[1], [0], [0], [1], [0, 0, 1, 1], [], []>} : vector<8x8xf32>, vector<8x256xf32>, vector<8x256xf32> -> vector<8x256xf32>
    %283 = arith.addf %278, %282 : vector<8x256xf32>
    %cst_119 = arith.constant 0.000000e+00 : f32
    %284 = vector.broadcast %cst_119 : f32 to vector<8x256xf32>
    %285 = arith.maximumf %283, %284 : vector<8x256xf32>
    %cst_120 = arith.constant dense<0.000000e+00> : vector<24x256xf32>
    %286 = tpu.matmul %191, %285, %cst_120 {dimension_numbers = #tpu.dot_dimension_numbers<[1], [0], [0], [1], [0, 0, 1, 1], [], []>} : vector<24x8xf32>, vector<8x256xf32>, vector<24x256xf32> -> vector<24x256xf32>
    %c1_121 = arith.constant 1 : index
    %c0_122 = arith.constant 0 : index
    %c0_123 = arith.constant 0 : index
    %287 = vector.load %arg4[%c1_121, %c0_122, %c0_123] : memref<2x24x256xf32, #tpu.memory_space<vmem>>, vector<1x24x256xf32>
    %288 = vector.shape_cast %287 : vector<1x24x256xf32> to vector<24x256xf32>
    %289 = vector.shape_cast %286 : vector<24x256xf32> to vector<1x24x256xf32>
    tpu.vector_store %arg4[%c1_121, %c0_122, %c0_123], %289 {strides = array<i32>} : memref<2x24x256xf32, #tpu.memory_space<vmem>>, vector<1x24x256xf32>,
    return
  }
  func.func @transform_0(%arg0: i32) -> (i32, i32, i32) {
    %c0_i32 = arith.constant 0 : i32
    %c0_i32_0 = arith.constant 0 : i32
    %c0_i32_1 = arith.constant 0 : i32
    return %arg0, %c0_i32, %c0_i32_0 : i32, i32, i32
  }
  func.func @transform_1(%arg0: i32) -> (i32, i32, i32) {
    %c0_i32 = arith.constant 0 : i32
    %c0_i32_0 = arith.constant 0 : i32
    %c0_i32_1 = arith.constant 0 : i32
    %c0_i32_2 = arith.constant 0 : i32
    return %c0_i32, %c0_i32_0, %c0_i32_1 : i32, i32, i32
  }
  func.func @transform_2(%arg0: i32) -> (i32, i32) {
    %c0_i32 = arith.constant 0 : i32
    %c0_i32_0 = arith.constant 0 : i32
    %c0_i32_1 = arith.constant 0 : i32
    return %c0_i32, %c0_i32_0 : i32, i32
  }
  func.func @transform_3(%arg0: i32) -> (i32, i32, i32) {
    %c0_i32 = arith.constant 0 : i32
    %c0_i32_0 = arith.constant 0 : i32
    %c0_i32_1 = arith.constant 0 : i32
    return %arg0, %c0_i32, %c0_i32_0 : i32, i32, i32
  }
}

</mosaic_0001>

<llo_original>
// kernel: tpu_custom_call.1
$region0: #{tpu_custom_call.1}
  #allocation0 [shape = 'u32[]', space=smem, size = 0x4, offset = 0x4, fixed_abs, tag = 'smem constant byte address 0x4 - core index']
  #allocation1 [shape = 'u32[72,128]{1,0:T(1,128)}', space=vmem, size = 0x9000, scoped, tag = 'internal scratch']
  %s0 = inlined_call_operand.vmem [shape: f32[2,8,256], index: 0, kind: input, shape index: {}]
  %s1 = inlined_call_operand.vmem [shape: f32[9,8,8], index: 1, kind: input, shape index: {}]
  %s2 = inlined_call_operand.vmem [shape: f32[24,8], index: 2, kind: input, shape index: {}]
  %s3 = inlined_call_operand.hbm [shape: f32[2,24,256], index: 3, kind: output, shape index: {}]
  %s4 = sld [smem:[#allocation0]]
  $region22: #{tpu_custom_call.1} parent=0
    _
  %s6 = ssub.s32 1, %s4
  %s7 = scalar_select 0, %s6, %s4
  $region1: #{tpu_custom_call.1} parent=0
    #allocation2 [shape = 'u8[49152]{0}', space=vmem, size = 0xc000, scoped, tag = 'output window, operand 0, single buffered']
    #allocation3 [shape = 's32[1]{0}', space=sflag, size = 0x4, scoped, tag = 'scoped memory for tpu_custom_call.1']
    %8 = vsyncpa [#allocation3], 0
    // Predicated region
    $region2: #{tpu_custom_call.1} parent=1 // pred_check
      _
    $region3: #{tpu_custom_call.1} parent=1 // pred_check_branch
      %10 = sbr.rel (0) target = $region5
    $region4: #{tpu_custom_call.1} parent=1 // pred_region
      _
    $region5: #{tpu_custom_call.1} parent=1 // pred_fallthru
      _
    // Predicated region
    $region6: #{tpu_custom_call.1} parent=1 // pred_check
      _
    $region7: #{tpu_custom_call.1} parent=1 // pred_check_branch
      %12 = sbr.rel (0) target = $region9
    $region8: #{tpu_custom_call.1} parent=1 // pred_region
      _
    $region9: #{tpu_custom_call.1} parent=1 // pred_fallthru
      _
    // Predicated region
    $region10: #{tpu_custom_call.1} parent=1 // pred_check
      _
    $region11: #{tpu_custom_call.1} parent=1 // pred_check_branch
      %14 = sbr.rel (0) target = $region13
    $region12: #{tpu_custom_call.1} parent=1 // pred_region
      _
    $region13: #{tpu_custom_call.1} parent=1 // pred_fallthru
      _
    %v15 = vlaneseq
    %v16 = vand.u32 %v15, 127
    %v17 = vadd.s32 %v16, 128
    %v18 = vshra.s32 %v16, 4
    %v19 = vshra.s32 %v17, 4
    %v20 = vand.u32 %v16, 15
    %v21 = vand.u32 %v17, 15
    %v22 = vadd.s32 %v18, 4294967295
    %v23 = vadd.s32 %v19, 4294967295
    %vm24 = vcmp.ge.s32.totalorder %v22, 0
    %vm25 = vcmp.ge.s32.totalorder %v23, 0
    %vm26 = vcmp.lt.s32.totalorder %v22, 16
    %vm27 = vcmp.lt.s32.totalorder %v23, 16
    %vm28 = vmand %vm24, %vm26
    %vm29 = vmand %vm25, %vm27
    %v30 = vadd.s32 %v20, 4294967295
    %v31 = vadd.s32 %v21, 4294967295
    %vm32 = vcmp.ge.s32.totalorder %v30, 0
    %vm33 = vcmp.ge.s32.totalorder %v31, 0
    %vm34 = vmand %vm28, %vm32
    %vm35 = vmand %vm29, %vm33
    %vm36 = vcmp.lt.s32.totalorder %v30, 16
    %vm37 = vcmp.lt.s32.totalorder %v31, 16
    %vm38 = vmand %vm34, %vm36
    %vm39 = vmand %vm35, %vm37
    %v40 = vsel %vm38, 1, 0
    %v41 = vsel %vm39, 1, 0
    %v42 = vcvt.s32.f32 %v40
    %v43 = vcvt.s32.f32 %v41
    %vm44 = vcmp.ge.s32.totalorder %v20, 0
    %vm45 = vcmp.ge.s32.totalorder %v21, 0
    %vm46 = vmand %vm28, %vm44
    %vm47 = vmand %vm29, %vm45
    %vm48 = vcmp.lt.s32.totalorder %v20, 16
    %vm49 = vcmp.lt.s32.totalorder %v21, 16
    %vm50 = vmand %vm46, %vm48
    %vm51 = vmand %vm47, %vm49
    %v52 = vsel %vm50, 1, 0
    %v53 = vsel %vm51, 1, 0
    %v54 = vcvt.s32.f32 %v52
    %v55 = vcvt.s32.f32 %v53
    %v56 = vadd.s32 %v20, 1
    %v57 = vadd.s32 %v21, 1
    %vm58 = vcmp.ge.s32.totalorder %v56, 0
    %vm59 = vcmp.ge.s32.totalorder %v57, 0
    %vm60 = vmand %vm28, %vm58
    %vm61 = vmand %vm29, %vm59
    %vm62 = vcmp.lt.s32.totalorder %v56, 16
    %vm63 = vcmp.lt.s32.totalorder %v57, 16
    %vm64 = vmand %vm60, %vm62
    %vm65 = vmand %vm61, %vm63
    %v66 = vsel %vm64, 1, 0
    %v67 = vsel %vm65, 1, 0
    %v68 = vcvt.s32.f32 %v66
    %v69 = vcvt.s32.f32 %v67
    %vm70 = vcmp.ge.s32.totalorder %v18, 0
    %vm71 = vcmp.ge.s32.totalorder %v19, 0
    %vm72 = vcmp.lt.s32.totalorder %v18, 16
    %vm73 = vcmp.lt.s32.totalorder %v19, 16
    %vm74 = vmand %vm70, %vm72
    %vm75 = vmand %vm71, %vm73
    %vm76 = vmand %vm74, %vm32
    %vm77 = vmand %vm75, %vm33
    %vm78 = vmand %vm76, %vm36
    %vm79 = vmand %vm77, %vm37
    %v80 = vsel %vm78, 1, 0
    %v81 = vsel %vm79, 1, 0
    %v82 = vcvt.s32.f32 %v80
    %v83 = vcvt.s32.f32 %v81
    %vm84 = vmand %vm74, %vm58
    %vm85 = vmand %vm75, %vm59
    %vm86 = vmand %vm84, %vm62
    %vm87 = vmand %vm85, %vm63
    %v88 = vsel %vm86, 1, 0
    %v89 = vsel %vm87, 1, 0
    %v90 = vcvt.s32.f32 %v88
    %v91 = vcvt.s32.f32 %v89
    %v92 = vadd.s32 %v18, 1
    %v93 = vadd.s32 %v19, 1
    %vm94 = vcmp.ge.s32.totalorder %v92, 0
    %vm95 = vcmp.ge.s32.totalorder %v93, 0
    %vm96 = vcmp.lt.s32.totalorder %v92, 16
    %vm97 = vcmp.lt.s32.totalorder %v93, 16
    %vm98 = vmand %vm94, %vm96
    %vm99 = vmand %vm95, %vm97
    %vm100 = vmand %vm98, %vm32
    %vm101 = vmand %vm99, %vm33
    %vm102 = vmand %vm100, %vm36
    %vm103 = vmand %vm101, %vm37
    %v104 = vsel %vm102, 1, 0
    %v105 = vsel %vm103, 1, 0
    %v106 = vcvt.s32.f32 %v104
    %v107 = vcvt.s32.f32 %v105
    %vm108 = vmand %vm98, %vm44
    %vm109 = vmand %vm99, %vm45
    %vm110 = vmand %vm108, %vm48
    %vm111 = vmand %vm109, %vm49
    %v112 = vsel %vm110, 1, 0
    %v113 = vsel %vm111, 1, 0
    %v114 = vcvt.s32.f32 %v112
    %v115 = vcvt.s32.f32 %v113
    %vm116 = vmand %vm98, %vm58
    %vm117 = vmand %vm99, %vm59
    %vm118 = vmand %vm116, %vm62
    %vm119 = vmand %vm117, %vm63
    %v120 = vsel %vm118, 1, 0
    %v121 = vsel %vm119, 1, 0
    %v122 = vcvt.s32.f32 %v120
    %v123 = vcvt.s32.f32 %v121
    %v124 = vld [vmem:[%s1] sm:$0xff]
    %s125 = scalar_lea.vmem %s1, 8
    %v126 = vld [vmem:[%s125] sm:$0xff]
    %s127 = scalar_lea.vmem %s1, 16
    %v128 = vld [vmem:[%s127] sm:$0xff]
    %s129 = scalar_lea.vmem %s1, 24
    %v130 = vld [vmem:[%s129] sm:$0xff]
    %s131 = scalar_lea.vmem %s1, 32
    %v132 = vld [vmem:[%s131] sm:$0xff]
    %s133 = scalar_lea.vmem %s1, 40
    %v134 = vld [vmem:[%s133] sm:$0xff]
    %s135 = scalar_lea.vmem %s1, 48
    %v136 = vld [vmem:[%s135] sm:$0xff]
    %s137 = scalar_lea.vmem %s1, 56
    %v138 = vld [vmem:[%s137] sm:$0xff]
    %s139 = scalar_lea.vmem %s1, 64
    %v140 = vld [vmem:[%s139] sm:$0xff]
    %v141 = vld [vmem:[%s2] sm:$0xff]
    %v142 = vld [vmem:[%s2 + $0x8] sm:$0xff]
    %v143 = vld [vmem:[%s2 + $0x10] sm:$0xff]
    %v144 = vld [vmem:[%s0] sm:$0xff]
    %v145 = vld [vmem:[%s0 + $0x8] sm:$0xff]
    %146 = vrot.lane.b32.xlu0 %v144, 17
    %v147 = vpop.permute.xlu0 %146
    %148 = vrot.lane.b32.xlu0 %v145, 17
    %v149 = vpop.permute.xlu0 %148
    %vm150 = vcmp.lt.s32.totalorder %v16, 17
    %v151 = vsel %vm150, %v147, %v149
    %v152 = vsel %vm150, %v149, %v147
    %v153 = vmul.f32 %v152, %v42
    %v154 = vmul.f32 %v151, %v43
    %155 = vrot.lane.b32.xlu0 %v144, 16
    %v156 = vpop.permute.xlu0 %155
    %157 = vrot.lane.b32.xlu0 %v145, 16
    %v158 = vpop.permute.xlu0 %157
    %vm159 = vcmp.lt.s32.totalorder %v16, 16
    %v160 = vsel %vm159, %v156, %v158
    %v161 = vsel %vm159, %v158, %v156
    %v162 = vmul.f32 %v161, %v54
    %v163 = vmul.f32 %v160, %v55
    %vm164 = vcmask 64512
    %v166 = vsel %vm164, %v126, 0
    %168 = vmatpush.msra.mxu0 0.0
    %169 = vmatpush.msra.mxu0 0.0
    %170 = vmatpush.msra.mxu0 0.0
    %171 = vmatpush.msra.mxu0 0.0
    %172 = vmatpush.msra.mxu0 0.0
    %173 = vmatpush.msra.mxu0 0.0
    %174 = vmatpush.msra.mxu0 0.0
    %175 = vmatpush.msra.mxu0 0.0
    %176 = vmatpush.msra.mxu0 0.0
    %177 = vmatpush.msra.mxu0 0.0
    %178 = vmatpush.msra.mxu0 0.0
    %179 = vmatpush.msra.mxu0 0.0
    %180 = vmatpush.msra.mxu0 0.0
    %181 = vmatpush.msra.mxu0 0.0
    %182 = vmatpush.msra.mxu0 0.0
    %183 = vmatpush.msra.mxu0 %v162
    %184 = vmatmul.f32.gmra.mxu0 %v166
    %v185 = vpop.f32.mrf.mxu0
    %v186 = vadd.f32 0.0, %v185
    %187 = vdwg.mxu0
    %188 = vmatpush.msra.mxu0 0.0
    %189 = vmatpush.msra.mxu0 0.0
    %190 = vmatpush.msra.mxu0 0.0
    %191 = vmatpush.msra.mxu0 0.0
    %192 = vmatpush.msra.mxu0 0.0
    %193 = vmatpush.msra.mxu0 0.0
    %194 = vmatpush.msra.mxu0 0.0
    %195 = vmatpush.msra.mxu0 0.0
    %196 = vmatpush.msra.mxu0 0.0
    %197 = vmatpush.msra.mxu0 0.0
    %198 = vmatpush.msra.mxu0 0.0
    %199 = vmatpush.msra.mxu0 0.0
    %200 = vmatpush.msra.mxu0 0.0
    %201 = vmatpush.msra.mxu0 0.0
    %202 = vmatpush.msra.mxu0 0.0
    %203 = vmatpush.msra.mxu0 %v163
    %204 = vmatmul.f32.gmra.mxu0 %v166
    %v205 = vpop.f32.mrf.mxu0
    %v206 = vadd.f32 0.0, %v205
    %207 = vdwg.mxu0
    %v209 = vsel %vm164, %v124, 0
    %211 = vmatpush.msra.mxu0 0.0
    %212 = vmatpush.msra.mxu0 0.0
    %213 = vmatpush.msra.mxu0 0.0
    %214 = vmatpush.msra.mxu0 0.0
    %215 = vmatpush.msra.mxu0 0.0
    %216 = vmatpush.msra.mxu0 0.0
    %217 = vmatpush.msra.mxu0 0.0
    %218 = vmatpush.msra.mxu0 0.0
    %219 = vmatpush.msra.mxu0 0.0
    %220 = vmatpush.msra.mxu0 0.0
    %221 = vmatpush.msra.mxu0 0.0
    %222 = vmatpush.msra.mxu0 0.0
    %223 = vmatpush.msra.mxu0 0.0
    %224 = vmatpush.msra.mxu0 0.0
    %225 = vmatpush.msra.mxu0 0.0
    %226 = vmatpush.msra.mxu0 %v153
    %227 = vmatmul.f32.gmra.mxu0 %v209
    %v228 = vpop.f32.mrf.mxu0
    %v229 = vadd.f32 %v186, %v228
    %230 = vdwg.mxu0
    %231 = vmatpush.msra.mxu0 0.0
    %232 = vmatpush.msra.mxu0 0.0
    %233 = vmatpush.msra.mxu0 0.0
    %234 = vmatpush.msra.mxu0 0.0
    %235 = vmatpush.msra.mxu0 0.0
    %236 = vmatpush.msra.mxu0 0.0
    %237 = vmatpush.msra.mxu0 0.0
    %238 = vmatpush.msra.mxu0 0.0
    %239 = vmatpush.msra.mxu0 0.0
    %240 = vmatpush.msra.mxu0 0.0
    %241 = vmatpush.msra.mxu0 0.0
    %242 = vmatpush.msra.mxu0 0.0
    %243 = vmatpush.msra.mxu0 0.0
    %244 = vmatpush.msra.mxu0 0.0
    %245 = vmatpush.msra.mxu0 0.0
    %246 = vmatpush.msra.mxu0 %v154
    %247 = vmatmul.f32.gmra.mxu0 %v209
    %v248 = vpop.f32.mrf.mxu0
    %v249 = vadd.f32 %v206, %v248
    %250 = vdwg.mxu0
    %251 = vrot.lane.b32.xlu0 %v144, 15
    %v252 = vpop.permute.xlu0 %251
    %253 = vrot.lane.b32.xlu0 %v145, 15
    %v254 = vpop.permute.xlu0 %253
    %vm255 = vcmp.lt.s32.totalorder %v16, 15
    %v256 = vsel %vm255, %v252, %v254
    %v257 = vsel %vm255, %v254, %v252
    %v258 = vmul.f32 %v257, %v68
    %v259 = vmul.f32 %v256, %v69
    %v261 = vsel %vm164, %v128, 0
    %263 = vmatpush.msra.mxu0 0.0
    %264 = vmatpush.msra.mxu0 0.0
    %265 = vmatpush.msra.mxu0 0.0
    %266 = vmatpush.msra.mxu0 0.0
    %267 = vmatpush.msra.mxu0 0.0
    %268 = vmatpush.msra.mxu0 0.0
    %269 = vmatpush.msra.mxu0 0.0
    %270 = vmatpush.msra.mxu0 0.0
    %271 = vmatpush.msra.mxu0 0.0
    %272 = vmatpush.msra.mxu0 0.0
    %273 = vmatpush.msra.mxu0 0.0
    %274 = vmatpush.msra.mxu0 0.0
    %275 = vmatpush.msra.mxu0 0.0
    %276 = vmatpush.msra.mxu0 0.0
    %277 = vmatpush.msra.mxu0 0.0
    %278 = vmatpush.msra.mxu0 %v258
    %279 = vmatmul.f32.gmra.mxu0 %v261
    %v280 = vpop.f32.mrf.mxu0
    %v281 = vadd.f32 0.0, %v280
    %282 = vdwg.mxu0
    %283 = vmatpush.msra.mxu0 0.0
    %284 = vmatpush.msra.mxu0 0.0
    %285 = vmatpush.msra.mxu0 0.0
    %286 = vmatpush.msra.mxu0 0.0
    %287 = vmatpush.msra.mxu0 0.0
    %288 = vmatpush.msra.mxu0 0.0
    %289 = vmatpush.msra.mxu0 0.0
    %290 = vmatpush.msra.mxu0 0.0
    %291 = vmatpush.msra.mxu0 0.0
    %292 = vmatpush.msra.mxu0 0.0
    %293 = vmatpush.msra.mxu0 0.0
    %294 = vmatpush.msra.mxu0 0.0
    %295 = vmatpush.msra.mxu0 0.0
    %296 = vmatpush.msra.mxu0 0.0
    %297 = vmatpush.msra.mxu0 0.0
    %298 = vmatpush.msra.mxu0 %v259
    %299 = vmatmul.f32.gmra.mxu0 %v261
    %v300 = vpop.f32.mrf.mxu0
    %v301 = vadd.f32 0.0, %v300
    %302 = vdwg.mxu0
    %v303 = vadd.f32 %v229, %v281
    %v304 = vadd.f32 %v249, %v301
    %305 = vrot.lane.b32.xlu0 %v144, 1
    %v306 = vpop.permute.xlu0 %305
    %307 = vrot.lane.b32.xlu0 %v145, 1
    %v308 = vpop.permute.xlu0 %307
    %vm309 = vcmp.lt.s32.totalorder %v16, 1
    %v310 = vsel %vm309, %v306, %v308
    %v311 = vsel %vm309, %v308, %v306
    %v312 = vmul.f32 %v311, %v82
    %v313 = vmul.f32 %v310, %v83
    %v315 = vsel %vm164, %v130, 0
    %317 = vmatpush.msra.mxu0 0.0
    %318 = vmatpush.msra.mxu0 0.0
    %319 = vmatpush.msra.mxu0 0.0
    %320 = vmatpush.msra.mxu0 0.0
    %321 = vmatpush.msra.mxu0 0.0
    %322 = vmatpush.msra.mxu0 0.0
    %323 = vmatpush.msra.mxu0 0.0
    %324 = vmatpush.msra.mxu0 0.0
    %325 = vmatpush.msra.mxu0 0.0
    %326 = vmatpush.msra.mxu0 0.0
    %327 = vmatpush.msra.mxu0 0.0
    %328 = vmatpush.msra.mxu0 0.0
    %329 = vmatpush.msra.mxu0 0.0
    %330 = vmatpush.msra.mxu0 0.0
    %331 = vmatpush.msra.mxu0 0.0
    %332 = vmatpush.msra.mxu0 %v312
    %333 = vmatmul.f32.gmra.mxu0 %v315
    %v334 = vpop.f32.mrf.mxu0
    %v335 = vadd.f32 0.0, %v334
    %336 = vdwg.mxu0
    %337 = vmatpush.msra.mxu0 0.0
    %338 = vmatpush.msra.mxu0 0.0
    %339 = vmatpush.msra.mxu0 0.0
    %340 = vmatpush.msra.mxu0 0.0
    %341 = vmatpush.msra.mxu0 0.0
    %342 = vmatpush.msra.mxu0 0.0
    %343 = vmatpush.msra.mxu0 0.0
    %344 = vmatpush.msra.mxu0 0.0
    %345 = vmatpush.msra.mxu0 0.0
    %346 = vmatpush.msra.mxu0 0.0
    %347 = vmatpush.msra.mxu0 0.0
    %348 = vmatpush.msra.mxu0 0.0
    %349 = vmatpush.msra.mxu0 0.0
    %350 = vmatpush.msra.mxu0 0.0
    %351 = vmatpush.msra.mxu0 0.0
    %352 = vmatpush.msra.mxu0 %v313
    %353 = vmatmul.f32.gmra.mxu0 %v315
    %v354 = vpop.f32.mrf.mxu0
    %v355 = vadd.f32 0.0, %v354
    %356 = vdwg.mxu0
    %v357 = vadd.f32 %v303, %v335
    %v358 = vadd.f32 %v304, %v355
    %v360 = vsel %vm164, %v132, 0
    %362 = vmatpush.msra.mxu0 0.0
    %363 = vmatpush.msra.mxu0 0.0
    %364 = vmatpush.msra.mxu0 0.0
    %365 = vmatpush.msra.mxu0 0.0
    %366 = vmatpush.msra.mxu0 0.0
    %367 = vmatpush.msra.mxu0 0.0
    %368 = vmatpush.msra.mxu0 0.0
    %369 = vmatpush.msra.mxu0 0.0
    %370 = vmatpush.msra.mxu0 0.0
    %371 = vmatpush.msra.mxu0 0.0
    %372 = vmatpush.msra.mxu0 0.0
    %373 = vmatpush.msra.mxu0 0.0
    %374 = vmatpush.msra.mxu0 0.0
    %375 = vmatpush.msra.mxu0 0.0
    %376 = vmatpush.msra.mxu0 0.0
    %377 = vmatpush.msra.mxu0 %v144
    %378 = vmatmul.f32.gmra.mxu0 %v360
    %v379 = vpop.f32.mrf.mxu0
    %v380 = vadd.f32 0.0, %v379
    %381 = vdwg.mxu0
    %382 = vmatpush.msra.mxu0 0.0
    %383 = vmatpush.msra.mxu0 0.0
    %384 = vmatpush.msra.mxu0 0.0
    %385 = vmatpush.msra.mxu0 0.0
    %386 = vmatpush.msra.mxu0 0.0
    %387 = vmatpush.msra.mxu0 0.0
    %388 = vmatpush.msra.mxu0 0.0
    %389 = vmatpush.msra.mxu0 0.0
    %390 = vmatpush.msra.mxu0 0.0
    %391 = vmatpush.msra.mxu0 0.0
    %392 = vmatpush.msra.mxu0 0.0
    %393 = vmatpush.msra.mxu0 0.0
    %394 = vmatpush.msra.mxu0 0.0
    %395 = vmatpush.msra.mxu0 0.0
    %396 = vmatpush.msra.mxu0 0.0
    %397 = vmatpush.msra.mxu0 %v145
    %398 = vmatmul.f32.gmra.mxu0 %v360
    %v399 = vpop.f32.mrf.mxu0
    %v400 = vadd.f32 0.0, %v399
    %401 = vdwg.mxu0
    %v402 = vadd.f32 %v357, %v380
    %v403 = vadd.f32 %v358, %v400
    %404 = vrot.lane.b32.xlu0 %v144, 127
    %v405 = vpop.permute.xlu0 %404
    %406 = vrot.lane.b32.xlu0 %v145, 127
    %v407 = vpop.permute.xlu0 %406
    %vm408 = vcmp.lt.s32.totalorder %v16, 127
    %v409 = vsel %vm408, %v405, %v407
    %v410 = vsel %vm408, %v407, %v405
    %v411 = vmul.f32 %v409, %v90
    %v412 = vmul.f32 %v410, %v91
    %v414 = vsel %vm164, %v134, 0
    %416 = vmatpush.msra.mxu0 0.0
    %417 = vmatpush.msra.mxu0 0.0
    %418 = vmatpush.msra.mxu0 0.0
    %419 = vmatpush.msra.mxu0 0.0
    %420 = vmatpush.msra.mxu0 0.0
    %421 = vmatpush.msra.mxu0 0.0
    %422 = vmatpush.msra.mxu0 0.0
    %423 = vmatpush.msra.mxu0 0.0
    %424 = vmatpush.msra.mxu0 0.0
    %425 = vmatpush.msra.mxu0 0.0
    %426 = vmatpush.msra.mxu0 0.0
    %427 = vmatpush.msra.mxu0 0.0
    %428 = vmatpush.msra.mxu0 0.0
    %429 = vmatpush.msra.mxu0 0.0
    %430 = vmatpush.msra.mxu0 0.0
    %431 = vmatpush.msra.mxu0 %v411
    %432 = vmatmul.f32.gmra.mxu0 %v414
    %v433 = vpop.f32.mrf.mxu0
    %v434 = vadd.f32 0.0, %v433
    %435 = vdwg.mxu0
    %436 = vmatpush.msra.mxu0 0.0
    %437 = vmatpush.msra.mxu0 0.0
    %438 = vmatpush.msra.mxu0 0.0
    %439 = vmatpush.msra.mxu0 0.0
    %440 = vmatpush.msra.mxu0 0.0
    %441 = vmatpush.msra.mxu0 0.0
    %442 = vmatpush.msra.mxu0 0.0
    %443 = vmatpush.msra.mxu0 0.0
    %444 = vmatpush.msra.mxu0 0.0
    %445 = vmatpush.msra.mxu0 0.0
    %446 = vmatpush.msra.mxu0 0.0
    %447 = vmatpush.msra.mxu0 0.0
    %448 = vmatpush.msra.mxu0 0.0
    %449 = vmatpush.msra.mxu0 0.0
    %450 = vmatpush.msra.mxu0 0.0
    %451 = vmatpush.msra.mxu0 %v412
    %452 = vmatmul.f32.gmra.mxu0 %v414
    %v453 = vpop.f32.mrf.mxu0
    %v454 = vadd.f32 0.0, %v453
    %455 = vdwg.mxu0
    %v456 = vadd.f32 %v402, %v434
    %v457 = vadd.f32 %v403, %v454
    %458 = vrot.lane.b32.xlu0 %v144, 113
    %v459 = vpop.permute.xlu0 %458
    %460 = vrot.lane.b32.xlu0 %v145, 113
    %v461 = vpop.permute.xlu0 %460
    %vm462 = vcmp.lt.s32.totalorder %v16, 113
    %v463 = vsel %vm462, %v459, %v461
    %v464 = vsel %vm462, %v461, %v459
    %v465 = vmul.f32 %v463, %v106
    %v466 = vmul.f32 %v464, %v107
    %v468 = vsel %vm164, %v136, 0
    %470 = vmatpush.msra.mxu0 0.0
    %471 = vmatpush.msra.mxu0 0.0
    %472 = vmatpush.msra.mxu0 0.0
    %473 = vmatpush.msra.mxu0 0.0
    %474 = vmatpush.msra.mxu0 0.0
    %475 = vmatpush.msra.mxu0 0.0
    %476 = vmatpush.msra.mxu0 0.0
    %477 = vmatpush.msra.mxu0 0.0
    %478 = vmatpush.msra.mxu0 0.0
    %479 = vmatpush.msra.mxu0 0.0
    %480 = vmatpush.msra.mxu0 0.0
    %481 = vmatpush.msra.mxu0 0.0
    %482 = vmatpush.msra.mxu0 0.0
    %483 = vmatpush.msra.mxu0 0.0
    %484 = vmatpush.msra.mxu0 0.0
    %485 = vmatpush.msra.mxu0 %v465
    %486 = vmatmul.f32.gmra.mxu0 %v468
    %v487 = vpop.f32.mrf.mxu0
    %v488 = vadd.f32 0.0, %v487
    %489 = vdwg.mxu0
    %490 = vmatpush.msra.mxu0 0.0
    %491 = vmatpush.msra.mxu0 0.0
    %492 = vmatpush.msra.mxu0 0.0
    %493 = vmatpush.msra.mxu0 0.0
    %494 = vmatpush.msra.mxu0 0.0
    %495 = vmatpush.msra.mxu0 0.0
    %496 = vmatpush.msra.mxu0 0.0
    %497 = vmatpush.msra.mxu0 0.0
    %498 = vmatpush.msra.mxu0 0.0
    %499 = vmatpush.msra.mxu0 0.0
    %500 = vmatpush.msra.mxu0 0.0
    %501 = vmatpush.msra.mxu0 0.0
    %502 = vmatpush.msra.mxu0 0.0
    %503 = vmatpush.msra.mxu0 0.0
    %504 = vmatpush.msra.mxu0 0.0
    %505 = vmatpush.msra.mxu0 %v466
    %506 = vmatmul.f32.gmra.mxu0 %v468
    %v507 = vpop.f32.mrf.mxu0
    %v508 = vadd.f32 0.0, %v507
    %509 = vdwg.mxu0
    %v510 = vadd.f32 %v456, %v488
    %v511 = vadd.f32 %v457, %v508
    %512 = vrot.lane.b32.xlu0 %v144, 112
    %v513 = vpop.permute.xlu0 %512
    %514 = vrot.lane.b32.xlu0 %v145, 112
    %v515 = vpop.permute.xlu0 %514
    %vm516 = vcmp.lt.s32.totalorder %v16, 112
    %v517 = vsel %vm516, %v513, %v515
    %v518 = vsel %vm516, %v515, %v513
    %v519 = vmul.f32 %v517, %v114
    %v520 = vmul.f32 %v518, %v115
    %v522 = vsel %vm164, %v138, 0
    %524 = vmatpush.msra.mxu0 0.0
    %525 = vmatpush.msra.mxu0 0.0
    %526 = vmatpush.msra.mxu0 0.0
    %527 = vmatpush.msra.mxu0 0.0
    %528 = vmatpush.msra.mxu0 0.0
    %529 = vmatpush.msra.mxu0 0.0
    %530 = vmatpush.msra.mxu0 0.0
    %531 = vmatpush.msra.mxu0 0.0
    %532 = vmatpush.msra.mxu0 0.0
    %533 = vmatpush.msra.mxu0 0.0
    %534 = vmatpush.msra.mxu0 0.0
    %535 = vmatpush.msra.mxu0 0.0
    %536 = vmatpush.msra.mxu0 0.0
    %537 = vmatpush.msra.mxu0 0.0
    %538 = vmatpush.msra.mxu0 0.0
    %539 = vmatpush.msra.mxu0 %v519
    %540 = vmatmul.f32.gmra.mxu0 %v522
    %v541 = vpop.f32.mrf.mxu0
    %v542 = vadd.f32 0.0, %v541
    %543 = vdwg.mxu0
    %544 = vmatpush.msra.mxu0 0.0
    %545 = vmatpush.msra.mxu0 0.0
    %546 = vmatpush.msra.mxu0 0.0
    %547 = vmatpush.msra.mxu0 0.0
    %548 = vmatpush.msra.mxu0 0.0
    %549 = vmatpush.msra.mxu0 0.0
    %550 = vmatpush.msra.mxu0 0.0
    %551 = vmatpush.msra.mxu0 0.0
    %552 = vmatpush.msra.mxu0 0.0
    %553 = vmatpush.msra.mxu0 0.0
    %554 = vmatpush.msra.mxu0 0.0
    %555 = vmatpush.msra.mxu0 0.0
    %556 = vmatpush.msra.mxu0 0.0
    %557 = vmatpush.msra.mxu0 0.0
    %558 = vmatpush.msra.mxu0 0.0
    %559 = vmatpush.msra.mxu0 %v520
    %560 = vmatmul.f32.gmra.mxu0 %v522
    %v561 = vpop.f32.mrf.mxu0
    %v562 = vadd.f32 0.0, %v561
    %563 = vdwg.mxu0
    %v564 = vadd.f32 %v510, %v542
    %v565 = vadd.f32 %v511, %v562
    %566 = vrot.lane.b32.xlu0 %v144, 111
    %v567 = vpop.permute.xlu0 %566
    %568 = vrot.lane.b32.xlu0 %v145, 111
    %v569 = vpop.permute.xlu0 %568
    %vm570 = vcmp.lt.s32.totalorder %v16, 111
    %v571 = vsel %vm570, %v567, %v569
    %v572 = vsel %vm570, %v569, %v567
    %v573 = vmul.f32 %v571, %v122
    %v574 = vmul.f32 %v572, %v123
    %v576 = vsel %vm164, %v140, 0
    %578 = vmatpush.msra.mxu0 0.0
    %579 = vmatpush.msra.mxu0 0.0
    %580 = vmatpush.msra.mxu0 0.0
    %581 = vmatpush.msra.mxu0 0.0
    %582 = vmatpush.msra.mxu0 0.0
    %583 = vmatpush.msra.mxu0 0.0
    %584 = vmatpush.msra.mxu0 0.0
    %585 = vmatpush.msra.mxu0 0.0
    %586 = vmatpush.msra.mxu0 0.0
    %587 = vmatpush.msra.mxu0 0.0
    %588 = vmatpush.msra.mxu0 0.0
    %589 = vmatpush.msra.mxu0 0.0
    %590 = vmatpush.msra.mxu0 0.0
    %591 = vmatpush.msra.mxu0 0.0
    %592 = vmatpush.msra.mxu0 0.0
    %593 = vmatpush.msra.mxu0 %v573
    %594 = vmatmul.f32.gmra.mxu0 %v576
    %v595 = vpop.f32.mrf.mxu0
    %v596 = vadd.f32 0.0, %v595
    %597 = vdwg.mxu0
    %598 = vmatpush.msra.mxu0 0.0
    %599 = vmatpush.msra.mxu0 0.0
    %600 = vmatpush.msra.mxu0 0.0
    %601 = vmatpush.msra.mxu0 0.0
    %602 = vmatpush.msra.mxu0 0.0
    %603 = vmatpush.msra.mxu0 0.0
    %604 = vmatpush.msra.mxu0 0.0
    %605 = vmatpush.msra.mxu0 0.0
    %606 = vmatpush.msra.mxu0 0.0
    %607 = vmatpush.msra.mxu0 0.0
    %608 = vmatpush.msra.mxu0 0.0
    %609 = vmatpush.msra.mxu0 0.0
    %610 = vmatpush.msra.mxu0 0.0
    %611 = vmatpush.msra.mxu0 0.0
    %612 = vmatpush.msra.mxu0 0.0
    %613 = vmatpush.msra.mxu0 %v574
    %614 = vmatmul.f32.gmra.mxu0 %v576
    %v615 = vpop.f32.mrf.mxu0
    %v616 = vadd.f32 0.0, %v615
    %617 = vdwg.mxu0
    %v618 = vadd.f32 %v564, %v596
    %v619 = vadd.f32 %v565, %v616
    %v620 = vmax.f32 %v618, 0.0
    %v621 = vmax.f32 %v619, 0.0
    %v623 = vsel %vm164, %v141, 0
    %v626 = vsel %vm164, %v142, 0
    %v629 = vsel %vm164, %v143, 0
    %631 = vmatpush.msra.mxu0 0.0
    %632 = vmatpush.msra.mxu0 0.0
    %633 = vmatpush.msra.mxu0 0.0
    %634 = vmatpush.msra.mxu0 0.0
    %635 = vmatpush.msra.mxu0 0.0
    %636 = vmatpush.msra.mxu0 0.0
    %637 = vmatpush.msra.mxu0 0.0
    %638 = vmatpush.msra.mxu0 0.0
    %639 = vmatpush.msra.mxu0 0.0
    %640 = vmatpush.msra.mxu0 0.0
    %641 = vmatpush.msra.mxu0 0.0
    %642 = vmatpush.msra.mxu0 0.0
    %643 = vmatpush.msra.mxu0 0.0
    %644 = vmatpush.msra.mxu0 0.0
    %645 = vmatpush.msra.mxu0 0.0
    %646 = vmatpush.msra.mxu0 %v620
    %647 = vmatmul.f32.gmra.mxu0 %v623
    %v648 = vpop.f32.mrf.mxu0
    %v649 = vadd.f32 0.0, %v648
    %650 = vmatmul.f32.gmra.mxu0 %v626
    %v651 = vpop.f32.mrf.mxu0
    %v652 = vadd.f32 0.0, %v651
    %653 = vmatmul.f32.gmra.mxu0 %v629
    %v654 = vpop.f32.mrf.mxu0
    %v655 = vadd.f32 0.0, %v654
    %656 = vdwg.mxu0
    %657 = vmatpush.msra.mxu0 0.0
    %658 = vmatpush.msra.mxu0 0.0
    %659 = vmatpush.msra.mxu0 0.0
    %660 = vmatpush.msra.mxu0 0.0
    %661 = vmatpush.msra.mxu0 0.0
    %662 = vmatpush.msra.mxu0 0.0
    %663 = vmatpush.msra.mxu0 0.0
    %664 = vmatpush.msra.mxu0 0.0
    %665 = vmatpush.msra.mxu0 0.0
    %666 = vmatpush.msra.mxu0 0.0
    %667 = vmatpush.msra.mxu0 0.0
    %668 = vmatpush.msra.mxu0 0.0
    %669 = vmatpush.msra.mxu0 0.0
    %670 = vmatpush.msra.mxu0 0.0
    %671 = vmatpush.msra.mxu0 0.0
    %672 = vmatpush.msra.mxu0 %v621
    %673 = vmatmul.f32.gmra.mxu0 %v623
    %v674 = vpop.f32.mrf.mxu0
    %v675 = vadd.f32 0.0, %v674
    %676 = vmatmul.f32.gmra.mxu0 %v626
    %v677 = vpop.f32.mrf.mxu0
    %v678 = vadd.f32 0.0, %v677
    %679 = vmatmul.f32.gmra.mxu0 %v629
    %v680 = vpop.f32.mrf.mxu0
    %v681 = vadd.f32 0.0, %v680
    %682 = vdwg.mxu0
    %683 = vst [vmem:[#allocation2] sm:$0xff] %v649
    %684 = vst [vmem:[#allocation2 + $0x8] sm:$0xff] %v675
    %685 = vst [vmem:[#allocation2 + $0x10] sm:$0xff] %v652
    %686 = vst [vmem:[#allocation2 + $0x18] sm:$0xff] %v678
    %687 = vst [vmem:[#allocation2 + $0x20] sm:$0xff] %v655
    %688 = vst [vmem:[#allocation2 + $0x28] sm:$0xff] %v681
    %s689 = scalar_lea.vmem %s0, 16
    %v690 = vld [vmem:[%s689] sm:$0xff]
    %v691 = vld [vmem:[%s689 + $0x8] sm:$0xff]
    %692 = vrot.lane.b32.xlu0 %v690, 17
    %v693 = vpop.permute.xlu0 %692
    %694 = vrot.lane.b32.xlu0 %v691, 17
    %v695 = vpop.permute.xlu0 %694
    %v696 = vsel %vm150, %v693, %v695
    %v697 = vsel %vm150, %v695, %v693
    %v698 = vmul.f32 %v697, %v42
    %v699 = vmul.f32 %v696, %v43
    %700 = vrot.lane.b32.xlu0 %v690, 16
    %v701 = vpop.permute.xlu0 %700
    %702 = vrot.lane.b32.xlu0 %v691, 16
    %v703 = vpop.permute.xlu0 %702
    %v704 = vsel %vm159, %v701, %v703
    %v705 = vsel %vm159, %v703, %v701
    %v706 = vmul.f32 %v705, %v54
    %v707 = vmul.f32 %v704, %v55
    %708 = vmatpush.msra.mxu0 0.0
    %709 = vmatpush.msra.mxu0 0.0
    %710 = vmatpush.msra.mxu0 0.0
    %711 = vmatpush.msra.mxu0 0.0
    %712 = vmatpush.msra.mxu0 0.0
    %713 = vmatpush.msra.mxu0 0.0
    %714 = vmatpush.msra.mxu0 0.0
    %715 = vmatpush.msra.mxu0 0.0
    %716 = vmatpush.msra.mxu0 0.0
    %717 = vmatpush.msra.mxu0 0.0
    %718 = vmatpush.msra.mxu0 0.0
    %719 = vmatpush.msra.mxu0 0.0
    %720 = vmatpush.msra.mxu0 0.0
    %721 = vmatpush.msra.mxu0 0.0
    %722 = vmatpush.msra.mxu0 0.0
    %723 = vmatpush.msra.mxu0 %v706
    %724 = vmatmul.f32.gmra.mxu0 %v166
    %v725 = vpop.f32.mrf.mxu0
    %v726 = vadd.f32 0.0, %v725
    %727 = vdwg.mxu0
    %728 = vmatpush.msra.mxu0 0.0
    %729 = vmatpush.msra.mxu0 0.0
    %730 = vmatpush.msra.mxu0 0.0
    %731 = vmatpush.msra.mxu0 0.0
    %732 = vmatpush.msra.mxu0 0.0
    %733 = vmatpush.msra.mxu0 0.0
    %734 = vmatpush.msra.mxu0 0.0
    %735 = vmatpush.msra.mxu0 0.0
    %736 = vmatpush.msra.mxu0 0.0
    %737 = vmatpush.msra.mxu0 0.0
    %738 = vmatpush.msra.mxu0 0.0
    %739 = vmatpush.msra.mxu0 0.0
    %740 = vmatpush.msra.mxu0 0.0
    %741 = vmatpush.msra.mxu0 0.0
    %742 = vmatpush.msra.mxu0 0.0
    %743 = vmatpush.msra.mxu0 %v707
    %744 = vmatmul.f32.gmra.mxu0 %v166
    %v745 = vpop.f32.mrf.mxu0
    %v746 = vadd.f32 0.0, %v745
    %747 = vdwg.mxu0
    %748 = vmatpush.msra.mxu0 0.0
    %749 = vmatpush.msra.mxu0 0.0
    %750 = vmatpush.msra.mxu0 0.0
    %751 = vmatpush.msra.mxu0 0.0
    %752 = vmatpush.msra.mxu0 0.0
    %753 = vmatpush.msra.mxu0 0.0
    %754 = vmatpush.msra.mxu0 0.0
    %755 = vmatpush.msra.mxu0 0.0
    %756 = vmatpush.msra.mxu0 0.0
    %757 = vmatpush.msra.mxu0 0.0
    %758 = vmatpush.msra.mxu0 0.0
    %759 = vmatpush.msra.mxu0 0.0
    %760 = vmatpush.msra.mxu0 0.0
    %761 = vmatpush.msra.mxu0 0.0
    %762 = vmatpush.msra.mxu0 0.0
    %763 = vmatpush.msra.mxu0 %v698
    %764 = vmatmul.f32.gmra.mxu0 %v209
    %v765 = vpop.f32.mrf.mxu0
    %v766 = vadd.f32 %v726, %v765
    %767 = vdwg.mxu0
    %768 = vmatpush.msra.mxu0 0.0
    %769 = vmatpush.msra.mxu0 0.0
    %770 = vmatpush.msra.mxu0 0.0
    %771 = vmatpush.msra.mxu0 0.0
    %772 = vmatpush.msra.mxu0 0.0
    %773 = vmatpush.msra.mxu0 0.0
    %774 = vmatpush.msra.mxu0 0.0
    %775 = vmatpush.msra.mxu0 0.0
    %776 = vmatpush.msra.mxu0 0.0
    %777 = vmatpush.msra.mxu0 0.0
    %778 = vmatpush.msra.mxu0 0.0
    %779 = vmatpush.msra.mxu0 0.0
    %780 = vmatpush.msra.mxu0 0.0
    %781 = vmatpush.msra.mxu0 0.0
    %782 = vmatpush.msra.mxu0 0.0
    %783 = vmatpush.msra.mxu0 %v699
    %784 = vmatmul.f32.gmra.mxu0 %v209
    %v785 = vpop.f32.mrf.mxu0
    %v786 = vadd.f32 %v746, %v785
    %787 = vdwg.mxu0
    %788 = vrot.lane.b32.xlu0 %v690, 15
    %v789 = vpop.permute.xlu0 %788
    %790 = vrot.lane.b32.xlu0 %v691, 15
    %v791 = vpop.permute.xlu0 %790
    %v792 = vsel %vm255, %v789, %v791
    %v793 = vsel %vm255, %v791, %v789
    %v794 = vmul.f32 %v793, %v68
    %v795 = vmul.f32 %v792, %v69
    %796 = vmatpush.msra.mxu0 0.0
    %797 = vmatpush.msra.mxu0 0.0
    %798 = vmatpush.msra.mxu0 0.0
    %799 = vmatpush.msra.mxu0 0.0
    %800 = vmatpush.msra.mxu0 0.0
    %801 = vmatpush.msra.mxu0 0.0
    %802 = vmatpush.msra.mxu0 0.0
    %803 = vmatpush.msra.mxu0 0.0
    %804 = vmatpush.msra.mxu0 0.0
    %805 = vmatpush.msra.mxu0 0.0
    %806 = vmatpush.msra.mxu0 0.0
    %807 = vmatpush.msra.mxu0 0.0
    %808 = vmatpush.msra.mxu0 0.0
    %809 = vmatpush.msra.mxu0 0.0
    %810 = vmatpush.msra.mxu0 0.0
    %811 = vmatpush.msra.mxu0 %v794
    %812 = vmatmul.f32.gmra.mxu0 %v261
    %v813 = vpop.f32.mrf.mxu0
    %v814 = vadd.f32 0.0, %v813
    %815 = vdwg.mxu0
    %816 = vmatpush.msra.mxu0 0.0
    %817 = vmatpush.msra.mxu0 0.0
    %818 = vmatpush.msra.mxu0 0.0
    %819 = vmatpush.msra.mxu0 0.0
    %820 = vmatpush.msra.mxu0 0.0
    %821 = vmatpush.msra.mxu0 0.0
    %822 = vmatpush.msra.mxu0 0.0
    %823 = vmatpush.msra.mxu0 0.0
    %824 = vmatpush.msra.mxu0 0.0
    %825 = vmatpush.msra.mxu0 0.0
    %826 = vmatpush.msra.mxu0 0.0
    %827 = vmatpush.msra.mxu0 0.0
    %828 = vmatpush.msra.mxu0 0.0
    %829 = vmatpush.msra.mxu0 0.0
    %830 = vmatpush.msra.mxu0 0.0
    %831 = vmatpush.msra.mxu0 %v795
    %832 = vmatmul.f32.gmra.mxu0 %v261
    %v833 = vpop.f32.mrf.mxu0
    %v834 = vadd.f32 0.0, %v833
    %835 = vdwg.mxu0
    %v836 = vadd.f32 %v766, %v814
    %v837 = vadd.f32 %v786, %v834
    %838 = vrot.lane.b32.xlu0 %v690, 1
    %v839 = vpop.permute.xlu0 %838
    %840 = vrot.lane.b32.xlu0 %v691, 1
    %v841 = vpop.permute.xlu0 %840
    %v842 = vsel %vm309, %v839, %v841
    %v843 = vsel %vm309, %v841, %v839
    %v844 = vmul.f32 %v843, %v82
    %v845 = vmul.f32 %v842, %v83
    %846 = vmatpush.msra.mxu0 0.0
    %847 = vmatpush.msra.mxu0 0.0
    %848 = vmatpush.msra.mxu0 0.0
    %849 = vmatpush.msra.mxu0 0.0
    %850 = vmatpush.msra.mxu0 0.0
    %851 = vmatpush.msra.mxu0 0.0
    %852 = vmatpush.msra.mxu0 0.0
    %853 = vmatpush.msra.mxu0 0.0
    %854 = vmatpush.msra.mxu0 0.0
    %855 = vmatpush.msra.mxu0 0.0
    %856 = vmatpush.msra.mxu0 0.0
    %857 = vmatpush.msra.mxu0 0.0
    %858 = vmatpush.msra.mxu0 0.0
    %859 = vmatpush.msra.mxu0 0.0
    %860 = vmatpush.msra.mxu0 0.0
    %861 = vmatpush.msra.mxu0 %v844
    %862 = vmatmul.f32.gmra.mxu0 %v315
    %v863 = vpop.f32.mrf.mxu0
    %v864 = vadd.f32 0.0, %v863
    %865 = vdwg.mxu0
    %866 = vmatpush.msra.mxu0 0.0
    %867 = vmatpush.msra.mxu0 0.0
    %868 = vmatpush.msra.mxu0 0.0
    %869 = vmatpush.msra.mxu0 0.0
    %870 = vmatpush.msra.mxu0 0.0
    %871 = vmatpush.msra.mxu0 0.0
    %872 = vmatpush.msra.mxu0 0.0
    %873 = vmatpush.msra.mxu0 0.0
    %874 = vmatpush.msra.mxu0 0.0
    %875 = vmatpush.msra.mxu0 0.0
    %876 = vmatpush.msra.mxu0 0.0
    %877 = vmatpush.msra.mxu0 0.0
    %878 = vmatpush.msra.mxu0 0.0
    %879 = vmatpush.msra.mxu0 0.0
    %880 = vmatpush.msra.mxu0 0.0
    %881 = vmatpush.msra.mxu0 %v845
    %882 = vmatmul.f32.gmra.mxu0 %v315
    %v883 = vpop.f32.mrf.mxu0
    %v884 = vadd.f32 0.0, %v883
    %885 = vdwg.mxu0
    %v886 = vadd.f32 %v836, %v864
    %v887 = vadd.f32 %v837, %v884
    %888 = vmatpush.msra.mxu0 0.0
    %889 = vmatpush.msra.mxu0 0.0
    %890 = vmatpush.msra.mxu0 0.0
    %891 = vmatpush.msra.mxu0 0.0
    %892 = vmatpush.msra.mxu0 0.0
    %893 = vmatpush.msra.mxu0 0.0
    %894 = vmatpush.msra.mxu0 0.0
    %895 = vmatpush.msra.mxu0 0.0
    %896 = vmatpush.msra.mxu0 0.0
    %897 = vmatpush.msra.mxu0 0.0
    %898 = vmatpush.msra.mxu0 0.0
    %899 = vmatpush.msra.mxu0 0.0
    %900 = vmatpush.msra.mxu0 0.0
    %901 = vmatpush.msra.mxu0 0.0
    %902 = vmatpush.msra.mxu0 0.0
    %903 = vmatpush.msra.mxu0 %v690
    %904 = vmatmul.f32.gmra.mxu0 %v360
    %v905 = vpop.f32.mrf.mxu0
    %v906 = vadd.f32 0.0, %v905
    %907 = vdwg.mxu0
    %908 = vmatpush.msra.mxu0 0.0
    %909 = vmatpush.msra.mxu0 0.0
    %910 = vmatpush.msra.mxu0 0.0
    %911 = vmatpush.msra.mxu0 0.0
    %912 = vmatpush.msra.mxu0 0.0
    %913 = vmatpush.msra.mxu0 0.0
    %914 = vmatpush.msra.mxu0 0.0
    %915 = vmatpush.msra.mxu0 0.0
    %916 = vmatpush.msra.mxu0 0.0
    %917 = vmatpush.msra.mxu0 0.0
    %918 = vmatpush.msra.mxu0 0.0
    %919 = vmatpush.msra.mxu0 0.0
    %920 = vmatpush.msra.mxu0 0.0
    %921 = vmatpush.msra.mxu0 0.0
    %922 = vmatpush.msra.mxu0 0.0
    %923 = vmatpush.msra.mxu0 %v691
    %924 = vmatmul.f32.gmra.mxu0 %v360
    %v925 = vpop.f32.mrf.mxu0
    %v926 = vadd.f32 0.0, %v925
    %927 = vdwg.mxu0
    %v928 = vadd.f32 %v886, %v906
    %v929 = vadd.f32 %v887, %v926
    %930 = vrot.lane.b32.xlu0 %v690, 127
    %v931 = vpop.permute.xlu0 %930
    %932 = vrot.lane.b32.xlu0 %v691, 127
    %v933 = vpop.permute.xlu0 %932
    %v934 = vsel %vm408, %v931, %v933
    %v935 = vsel %vm408, %v933, %v931
    %v936 = vmul.f32 %v934, %v90
    %v937 = vmul.f32 %v935, %v91
    %938 = vmatpush.msra.mxu0 0.0
    %939 = vmatpush.msra.mxu0 0.0
    %940 = vmatpush.msra.mxu0 0.0
    %941 = vmatpush.msra.mxu0 0.0
    %942 = vmatpush.msra.mxu0 0.0
    %943 = vmatpush.msra.mxu0 0.0
    %944 = vmatpush.msra.mxu0 0.0
    %945 = vmatpush.msra.mxu0 0.0
    %946 = vmatpush.msra.mxu0 0.0
    %947 = vmatpush.msra.mxu0 0.0
    %948 = vmatpush.msra.mxu0 0.0
    %949 = vmatpush.msra.mxu0 0.0
    %950 = vmatpush.msra.mxu0 0.0
    %951 = vmatpush.msra.mxu0 0.0
    %952 = vmatpush.msra.mxu0 0.0
    %953 = vmatpush.msra.mxu0 %v936
    %954 = vmatmul.f32.gmra.mxu0 %v414
    %v955 = vpop.f32.mrf.mxu0
    %v956 = vadd.f32 0.0, %v955
    %957 = vdwg.mxu0
    %958 = vmatpush.msra.mxu0 0.0
    %959 = vmatpush.msra.mxu0 0.0
    %960 = vmatpush.msra.mxu0 0.0
    %961 = vmatpush.msra.mxu0 0.0
    %962 = vmatpush.msra.mxu0 0.0
    %963 = vmatpush.msra.mxu0 0.0
    %964 = vmatpush.msra.mxu0 0.0
    %965 = vmatpush.msra.mxu0 0.0
    %966 = vmatpush.msra.mxu0 0.0
    %967 = vmatpush.msra.mxu0 0.0
    %968 = vmatpush.msra.mxu0 0.0
    %969 = vmatpush.msra.mxu0 0.0
    %970 = vmatpush.msra.mxu0 0.0
    %971 = vmatpush.msra.mxu0 0.0
    %972 = vmatpush.msra.mxu0 0.0
    %973 = vmatpush.msra.mxu0 %v937
    %974 = vmatmul.f32.gmra.mxu0 %v414
    %v975 = vpop.f32.mrf.mxu0
    %v976 = vadd.f32 0.0, %v975
    %977 = vdwg.mxu0
    %v978 = vadd.f32 %v928, %v956
    %v979 = vadd.f32 %v929, %v976
    %980 = vrot.lane.b32.xlu0 %v690, 113
    %v981 = vpop.permute.xlu0 %980
    %982 = vrot.lane.b32.xlu0 %v691, 113
    %v983 = vpop.permute.xlu0 %982
    %v984 = vsel %vm462, %v981, %v983
    %v985 = vsel %vm462, %v983, %v981
    %v986 = vmul.f32 %v984, %v106
    %v987 = vmul.f32 %v985, %v107
    %988 = vmatpush.msra.mxu0 0.0
    %989 = vmatpush.msra.mxu0 0.0
    %990 = vmatpush.msra.mxu0 0.0
    %991 = vmatpush.msra.mxu0 0.0
    %992 = vmatpush.msra.mxu0 0.0
    %993 = vmatpush.msra.mxu0 0.0
    %994 = vmatpush.msra.mxu0 0.0
    %995 = vmatpush.msra.mxu0 0.0
    %996 = vmatpush.msra.mxu0 0.0
    %997 = vmatpush.msra.mxu0 0.0
    %998 = vmatpush.msra.mxu0 0.0
    %999 = vmatpush.msra.mxu0 0.0
    %1000 = vmatpush.msra.mxu0 0.0
    %1001 = vmatpush.msra.mxu0 0.0
    %1002 = vmatpush.msra.mxu0 0.0
    %1003 = vmatpush.msra.mxu0 %v986
    %1004 = vmatmul.f32.gmra.mxu0 %v468
    %v1005 = vpop.f32.mrf.mxu0
    %v1006 = vadd.f32 0.0, %v1005
    %1007 = vdwg.mxu0
    %1008 = vmatpush.msra.mxu0 0.0
    %1009 = vmatpush.msra.mxu0 0.0
    %1010 = vmatpush.msra.mxu0 0.0
    %1011 = vmatpush.msra.mxu0 0.0
    %1012 = vmatpush.msra.mxu0 0.0
    %1013 = vmatpush.msra.mxu0 0.0
    %1014 = vmatpush.msra.mxu0 0.0
    %1015 = vmatpush.msra.mxu0 0.0
    %1016 = vmatpush.msra.mxu0 0.0
    %1017 = vmatpush.msra.mxu0 0.0
    %1018 = vmatpush.msra.mxu0 0.0
    %1019 = vmatpush.msra.mxu0 0.0
    %1020 = vmatpush.msra.mxu0 0.0
    %1021 = vmatpush.msra.mxu0 0.0
    %1022 = vmatpush.msra.mxu0 0.0
    %1023 = vmatpush.msra.mxu0 %v987
    %1024 = vmatmul.f32.gmra.mxu0 %v468
    %v1025 = vpop.f32.mrf.mxu0
    %v1026 = vadd.f32 0.0, %v1025
    %1027 = vdwg.mxu0
    %v1028 = vadd.f32 %v978, %v1006
    %v1029 = vadd.f32 %v979, %v1026
    %1030 = vrot.lane.b32.xlu0 %v690, 112
    %v1031 = vpop.permute.xlu0 %1030
    %1032 = vrot.lane.b32.xlu0 %v691, 112
    %v1033 = vpop.permute.xlu0 %1032
    %v1034 = vsel %vm516, %v1031, %v1033
    %v1035 = vsel %vm516, %v1033, %v1031
    %v1036 = vmul.f32 %v1034, %v114
    %v1037 = vmul.f32 %v1035, %v115
    %1038 = vmatpush.msra.mxu0 0.0
    %1039 = vmatpush.msra.mxu0 0.0
    %1040 = vmatpush.msra.mxu0 0.0
    %1041 = vmatpush.msra.mxu0 0.0
    %1042 = vmatpush.msra.mxu0 0.0
    %1043 = vmatpush.msra.mxu0 0.0
    %1044 = vmatpush.msra.mxu0 0.0
    %1045 = vmatpush.msra.mxu0 0.0
    %1046 = vmatpush.msra.mxu0 0.0
    %1047 = vmatpush.msra.mxu0 0.0
    %1048 = vmatpush.msra.mxu0 0.0
    %1049 = vmatpush.msra.mxu0 0.0
    %1050 = vmatpush.msra.mxu0 0.0
    %1051 = vmatpush.msra.mxu0 0.0
    %1052 = vmatpush.msra.mxu0 0.0
    %1053 = vmatpush.msra.mxu0 %v1036
    %1054 = vmatmul.f32.gmra.mxu0 %v522
    %v1055 = vpop.f32.mrf.mxu0
    %v1056 = vadd.f32 0.0, %v1055
    %1057 = vdwg.mxu0
    %1058 = vmatpush.msra.mxu0 0.0
    %1059 = vmatpush.msra.mxu0 0.0
    %1060 = vmatpush.msra.mxu0 0.0
    %1061 = vmatpush.msra.mxu0 0.0
    %1062 = vmatpush.msra.mxu0 0.0
    %1063 = vmatpush.msra.mxu0 0.0
    %1064 = vmatpush.msra.mxu0 0.0
    %1065 = vmatpush.msra.mxu0 0.0
    %1066 = vmatpush.msra.mxu0 0.0
    %1067 = vmatpush.msra.mxu0 0.0
    %1068 = vmatpush.msra.mxu0 0.0
    %1069 = vmatpush.msra.mxu0 0.0
    %1070 = vmatpush.msra.mxu0 0.0
    %1071 = vmatpush.msra.mxu0 0.0
    %1072 = vmatpush.msra.mxu0 0.0
    %1073 = vmatpush.msra.mxu0 %v1037
    %1074 = vmatmul.f32.gmra.mxu0 %v522
    %v1075 = vpop.f32.mrf.mxu0
    %v1076 = vadd.f32 0.0, %v1075
    %1077 = vdwg.mxu0
    %v1078 = vadd.f32 %v1028, %v1056
    %v1079 = vadd.f32 %v1029, %v1076
    %1080 = vrot.lane.b32.xlu0 %v690, 111
    %v1081 = vpop.permute.xlu0 %1080
    %1082 = vrot.lane.b32.xlu0 %v691, 111
    %v1083 = vpop.permute.xlu0 %1082
    %v1084 = vsel %vm570, %v1081, %v1083
    %v1085 = vsel %vm570, %v1083, %v1081
    %v1086 = vmul.f32 %v1084, %v122
    %v1087 = vmul.f32 %v1085, %v123
    %1088 = vmatpush.msra.mxu0 0.0
    %1089 = vmatpush.msra.mxu0 0.0
    %1090 = vmatpush.msra.mxu0 0.0
    %1091 = vmatpush.msra.mxu0 0.0
    %1092 = vmatpush.msra.mxu0 0.0
    %1093 = vmatpush.msra.mxu0 0.0
    %1094 = vmatpush.msra.mxu0 0.0
    %1095 = vmatpush.msra.mxu0 0.0
    %1096 = vmatpush.msra.mxu0 0.0
    %1097 = vmatpush.msra.mxu0 0.0
    %1098 = vmatpush.msra.mxu0 0.0
    %1099 = vmatpush.msra.mxu0 0.0
    %1100 = vmatpush.msra.mxu0 0.0
    %1101 = vmatpush.msra.mxu0 0.0
    %1102 = vmatpush.msra.mxu0 0.0
    %1103 = vmatpush.msra.mxu0 %v1086
    %1104 = vmatmul.f32.gmra.mxu0 %v576
    %v1105 = vpop.f32.mrf.mxu0
    %v1106 = vadd.f32 0.0, %v1105
    %1107 = vdwg.mxu0
    %1108 = vmatpush.msra.mxu0 0.0
    %1109 = vmatpush.msra.mxu0 0.0
    %1110 = vmatpush.msra.mxu0 0.0
    %1111 = vmatpush.msra.mxu0 0.0
    %1112 = vmatpush.msra.mxu0 0.0
    %1113 = vmatpush.msra.mxu0 0.0
    %1114 = vmatpush.msra.mxu0 0.0
    %1115 = vmatpush.msra.mxu0 0.0
    %1116 = vmatpush.msra.mxu0 0.0
    %1117 = vmatpush.msra.mxu0 0.0
    %1118 = vmatpush.msra.mxu0 0.0
    %1119 = vmatpush.msra.mxu0 0.0
    %1120 = vmatpush.msra.mxu0 0.0
    %1121 = vmatpush.msra.mxu0 0.0
    %1122 = vmatpush.msra.mxu0 0.0
    %1123 = vmatpush.msra.mxu0 %v1087
    %1124 = vmatmul.f32.gmra.mxu0 %v576
    %v1125 = vpop.f32.mrf.mxu0
    %v1126 = vadd.f32 0.0, %v1125
    %1127 = vdwg.mxu0
    %v1128 = vadd.f32 %v1078, %v1106
    %v1129 = vadd.f32 %v1079, %v1126
    %v1130 = vmax.f32 %v1128, 0.0
    %v1131 = vmax.f32 %v1129, 0.0
    %1132 = vmatpush.msra.mxu0 0.0
    %1133 = vmatpush.msra.mxu0 0.0
    %1134 = vmatpush.msra.mxu0 0.0
    %1135 = vmatpush.msra.mxu0 0.0
    %1136 = vmatpush.msra.mxu0 0.0
    %1137 = vmatpush.msra.mxu0 0.0
    %1138 = vmatpush.msra.mxu0 0.0
    %1139 = vmatpush.msra.mxu0 0.0
    %1140 = vmatpush.msra.mxu0 0.0
    %1141 = vmatpush.msra.mxu0 0.0
    %1142 = vmatpush.msra.mxu0 0.0
    %1143 = vmatpush.msra.mxu0 0.0
    %1144 = vmatpush.msra.mxu0 0.0
    %1145 = vmatpush.msra.mxu0 0.0
    %1146 = vmatpush.msra.mxu0 0.0
    %1147 = vmatpush.msra.mxu0 %v1130
    %1148 = vmatmul.f32.gmra.mxu0 %v623
    %v1149 = vpop.f32.mrf.mxu0
    %v1150 = vadd.f32 0.0, %v1149
    %1151 = vmatmul.f32.gmra.mxu0 %v626
    %v1152 = vpop.f32.mrf.mxu0
    %v1153 = vadd.f32 0.0, %v1152
    %1154 = vmatmul.f32.gmra.mxu0 %v629
    %v1155 = vpop.f32.mrf.mxu0
    %v1156 = vadd.f32 0.0, %v1155
    %1157 = vdwg.mxu0
    %1158 = vmatpush.msra.mxu0 0.0
    %1159 = vmatpush.msra.mxu0 0.0
    %1160 = vmatpush.msra.mxu0 0.0
    %1161 = vmatpush.msra.mxu0 0.0
    %1162 = vmatpush.msra.mxu0 0.0
    %1163 = vmatpush.msra.mxu0 0.0
    %1164 = vmatpush.msra.mxu0 0.0
    %1165 = vmatpush.msra.mxu0 0.0
    %1166 = vmatpush.msra.mxu0 0.0
    %1167 = vmatpush.msra.mxu0 0.0
    %1168 = vmatpush.msra.mxu0 0.0
    %1169 = vmatpush.msra.mxu0 0.0
    %1170 = vmatpush.msra.mxu0 0.0
    %1171 = vmatpush.msra.mxu0 0.0
    %1172 = vmatpush.msra.mxu0 0.0
    %1173 = vmatpush.msra.mxu0 %v1131
    %1174 = vmatmul.f32.gmra.mxu0 %v623
    %v1175 = vpop.f32.mrf.mxu0
    %v1176 = vadd.f32 0.0, %v1175
    %1177 = vmatmul.f32.gmra.mxu0 %v626
    %v1178 = vpop.f32.mrf.mxu0
    %v1179 = vadd.f32 0.0, %v1178
    %1180 = vmatmul.f32.gmra.mxu0 %v629
    %v1181 = vpop.f32.mrf.mxu0
    %v1182 = vadd.f32 0.0, %v1181
    %1183 = vdwg.mxu0
    %s1184 = scalar_lea.vmem [#allocation2], 48
    %1185 = vst [vmem:[%s1184] sm:$0xff] %v1150
    %1186 = vst [vmem:[%s1184 + $0x8] sm:$0xff] %v1176
    %1187 = vst [vmem:[%s1184 + $0x10] sm:$0xff] %v1153
    %1188 = vst [vmem:[%s1184 + $0x18] sm:$0xff] %v1179
    %1189 = vst [vmem:[%s1184 + $0x20] sm:$0xff] %v1156
    %1190 = vst [vmem:[%s1184 + $0x28] sm:$0xff] %v1182
    // Predicated region
    $region14: #{tpu_custom_call.1} parent=1 // pred_check
      _
    $region15: #{tpu_custom_call.1} parent=1 // pred_check_branch
      %1192 = sbr.rel (0) target = $region17
    $region16: #{tpu_custom_call.1} parent=1 // pred_region
      %1194 = vsyncadd [#allocation3], 0
      %s1195 = sshll.u32 [#allocation2], 4
      %s1196 = int_to_ptr.vmem [resolvable:$true] %s1195
      %s1197 = sshll.u32 %s3, 4
      %s1198 = int_to_ptr.hbm [resolvable:$true] %s1197
      %1203 = dma.vmem_to_hbm [thread:$0]  %s1196, 1536, %s1198, [#allocation3], 256, 256, 16
    $region17: #{tpu_custom_call.1} parent=1 // pred_fallthru
      _
    // Predicated region
    $region18: #{tpu_custom_call.1} parent=1 // pred_check
      _
    $region19: #{tpu_custom_call.1} parent=1 // pred_check_branch
      %1205 = sbr.rel (0) target = $region21
    $region20: #{tpu_custom_call.1} parent=1 // pred_region
      %1207 = dma.done [#allocation3], 1536
    $region21: #{tpu_custom_call.1} parent=1 // pred_fallthru
      _
    %1208 = vsyncpa [#allocation3], 1

</llo_original>
